<compile_context>
chip_gen: v7x
topology: tpu7x:2x2x1
jax: 0.10.0
libtpu: 0.0.40
codegen_flags: <defaults>
</compile_context>

<pallas_src>
import functools

import jax
import jax.numpy as jnp
from jax.experimental import pallas as pl
from jax.experimental.pallas import tpu as pltpu


def _rnn_context_encoder_kernel(ctx_ref, emb_ref, wih_ref, whh_ref,
                                bih_ref, bhh_ref, h_ref, xproj_ref,
                                *, seq_len, bblk, nhid, hpad):
    """One batch block of the encoder.

       ctx_ref   : (T*Bblk, 1)    int32 token ids, time-major within the block
       emb_ref   : (V, E)         embedding table
       wih_ref   : (E, 3*Hp)      W_ih^T, each gate zero-padded to Hp (multiple of 128) lanes
       whh_ref   : (Hp, 3*Hp)     W_hh^T, padded rows/cols are zero
       bih_ref   : (1, 3*Hp)      b_ih (padded lanes zero)
       bhh_ref   : (1, 3*Hp)      b_hh (padded lanes zero)
       h_ref     : (Bblk, H)      output: final GRU hidden state for this block
       xproj_ref : (T*Bblk, 3*Hp) f32 VMEM scratch holding the input projections
    """
    vocab = emb_ref.shape[0]
    tb = seq_len * bblk
    H, Hp = nhid, hpad

    # ---- fused embedding lookup + input projection for every timestep ------
    # proj[v] = emb[v] @ W_ih^T   (bf16 MXU feed, f32 accumulation)
    proj = jnp.dot(emb_ref[...].astype(jnp.bfloat16),
                   wih_ref[...].astype(jnp.bfloat16),
                   preferred_element_type=jnp.float32)               # (V, 3Hp)
    # Gather via one-hot matmul (0/1 are exact in bf16).
    # TODO(synk): for production vocab sizes keep emb_weight in HBM
    # (memory_space=pl.ANY) and DMA-gather only the T*B needed rows instead of
    # the O(T*B*V) one-hot / O(V*3H) proj table (VMEM blow-up on v7x).
    ids = ctx_ref[...]                                               # (tb, 1) int32
    vocab_iota = jax.lax.broadcasted_iota(jnp.int32, (tb, vocab), 1)
    onehot = jnp.where(ids == vocab_iota, 1.0, 0.0).astype(jnp.bfloat16)
    xproj_ref[...] = (jnp.dot(onehot, proj.astype(jnp.bfloat16),
                              preferred_element_type=jnp.float32)
                      + bih_ref[...])                                # bias added exactly in f32

    # ---- GRU recurrence (serial over T) -------------------------------------
    # TODO(synk): W_hh^T could be held resident on the MXU across steps via
    # pltpu.matmul_push_rhs / matmul_acc_lhs / matmul_pop; kept as jnp.dot here.
    whh = whh_ref[...].astype(jnp.bfloat16)                          # (Hp, 3Hp), loaded once
    bhh_b = jnp.broadcast_to(bhh_ref[...], (bblk, 3 * Hp))           # hoisted broadcast

    def step(t, h):                                                  # h: (Bblk, Hp) f32
        start = pl.multiple_of(t * bblk, bblk)
        xp = xproj_ref[pl.ds(start, bblk), :]                        # (Bblk, 3Hp) f32
        gh = jnp.dot(h.astype(jnp.bfloat16), whh,
                     preferred_element_type=jnp.float32) + bhh_b
        # Whole-vreg gate slices (each gate owns Hp = k*128 lanes).
        r = jax.nn.sigmoid(xp[:, 0:Hp] + gh[:, 0:Hp])
        z = jax.nn.sigmoid(xp[:, Hp:2 * Hp] + gh[:, Hp:2 * Hp])
        n = jnp.tanh(xp[:, 2 * Hp:3 * Hp] + r * gh[:, 2 * Hp:3 * Hp])
        return (1.0 - z) * n + z * h                                 # padded lanes stay exactly 0

    h0 = jnp.zeros((bblk, Hp), dtype=jnp.float32)
    h = jax.lax.fori_loop(0, seq_len, step, h0, unroll=True)

    h_ref[...] = h[:, :H].astype(h_ref.dtype)


def rnn_context_encoder(ctx, emb_weight, w_ih, w_hh, b_ih, b_hh):
    """ctx: [T, B] int ids. Returns ctx_h: [1, B, nhid] (PyTorch GRU h_n layout)."""
    T, B = ctx.shape
    three_h, E = w_ih.shape
    H = three_h // 3
    V = emb_weight.shape[0]
    Hp = max(128, ((H + 127) // 128) * 128)      # one (or more) full vregs per gate

    # Batch-block grid: two blocks (second TensorCore on v7x) when the per-block
    # batch still satisfies the 8-sublane constraint; otherwise a single block.
    G = 2 if (B % 16 == 0) else 1
    Bblk = B // G
    tb = T * Bblk

    # ---- wrapper-side layout plumbing only (no compute hoisted out) --------
    # ctx [T, B] -> per-block, time-major flat ids of shape (G*T*Bblk, 1)
    ctx_blocks = (ctx.astype(jnp.int32)
                  .reshape(T, G, Bblk)
                  .transpose(1, 0, 2)
                  .reshape(G * tb, 1))

    def pad_gates(w):                            # (rows, 3H) -> (rows, 3*Hp)
        rows = w.shape[0]
        w3 = w.reshape(rows, 3, H)
        w3 = jnp.pad(w3, ((0, 0), (0, 0), (0, Hp - H)))
        return w3.reshape(rows, 3 * Hp)

    wih_p = pad_gates(jnp.transpose(w_ih))                           # (E, 3Hp)
    whh_p = jnp.pad(pad_gates(jnp.transpose(w_hh)),
                    ((0, Hp - H), (0, 0)))                           # (Hp, 3Hp)
    bih_p = pad_gates(b_ih.reshape(1, three_h))                      # (1, 3Hp)
    bhh_p = pad_gates(b_hh.reshape(1, three_h))                      # (1, 3Hp)

    cost = pl.CostEstimate(
        flops=G * (2 * V * E * 3 * Hp + 2 * tb * V * 3 * Hp
                   + T * 2 * Bblk * Hp * 3 * Hp),
        transcendentals=G * T * Bblk * 3 * Hp,
        bytes_accessed=4 * (G * tb + V * E + E * 3 * Hp + Hp * 3 * Hp
                            + 2 * 3 * Hp + B * H),
    )

    h_out = pl.pallas_call(
        functools.partial(_rnn_context_encoder_kernel,
                          seq_len=T, bblk=Bblk, nhid=H, hpad=Hp),
        out_shape=jax.ShapeDtypeStruct((B, H), jnp.float32),
        grid_spec=pltpu.PrefetchScalarGridSpec(
            num_scalar_prefetch=0,
            grid=(G,),
            in_specs=[
                pl.BlockSpec((tb, 1), lambda i: (i, 0)),             # ctx ids (per batch block)
                pl.BlockSpec((V, E), lambda i: (0, 0)),              # embedding table
                pl.BlockSpec((E, 3 * Hp), lambda i: (0, 0)),         # W_ih^T (gate-padded)
                pl.BlockSpec((Hp, 3 * Hp), lambda i: (0, 0)),        # W_hh^T (gate-padded)
                pl.BlockSpec((1, 3 * Hp), lambda i: (0, 0)),         # b_ih
                pl.BlockSpec((1, 3 * Hp), lambda i: (0, 0)),         # b_hh
            ],
            out_specs=pl.BlockSpec((Bblk, H), lambda i: (i, 0)),
            scratch_shapes=[pltpu.VMEM((tb, 3 * Hp), jnp.float32)],
        ),
        compiler_params=pltpu.CompilerParams(
            dimension_semantics=("parallel",),
            vmem_limit_bytes=32 * 1024 * 1024,
        ),
        cost_estimate=cost,
    )(ctx_blocks, emb_weight, wih_p, whh_p, bih_p, bhh_p)

    return h_out.reshape(1, B, H)


if __name__ == "__main__":
    # Small shapes consistent with RnnContextEncoder(n, k, nembed, nhid, ...);
    # batch=16 so the batch-block grid=(2,) path (v7x second TensorCore) is exercised.
    vocab, nembed, nhid = 16, 32, 32
    seq_len, batch = 6, 16
    init_range = 0.5

    key = jax.random.PRNGKey(0)
    k_ctx, k_emb, k_wih, k_whh, k_bih, k_bhh = jax.random.split(key, 6)

    ctx = jax.random.randint(k_ctx, (seq_len, batch), 0, vocab, dtype=jnp.int32)
    emb = jax.random.uniform(k_emb, (vocab, nembed), jnp.float32, -init_range, init_range)
    w_ih = jax.random.uniform(k_wih, (3 * nhid, nembed), jnp.float32, -init_range, init_range)
    w_hh = jax.random.uniform(k_whh, (3 * nhid, nhid), jnp.float32, -init_range, init_range)
    # init_rnn() zeroes the GRU biases; random biases exercise the bias path
    # (semantics identical when the biases are zero).
    b_ih = jax.random.uniform(k_bih, (3 * nhid,), jnp.float32, -init_range, init_range)
    b_hh = jax.random.uniform(k_bhh, (3 * nhid,), jnp.float32, -init_range, init_range)

    ctx_h = jax.block_until_ready(
        rnn_context_encoder(ctx, emb, w_ih, w_hh, b_ih, b_hh))

    # Pure-JAX f32 reference (PyTorch GRU semantics, gate order r|z|n, h0 = 0).
    x = emb[ctx]                                   # (T, B, E)
    h = jnp.zeros((batch, nhid), jnp.float32)
    for t in range(seq_len):
        gi = x[t] @ w_ih.T + b_ih
        gh = h @ w_hh.T + b_hh
        i_r, i_z, i_n = jnp.split(gi, 3, axis=1)
        h_r, h_z, h_n = jnp.split(gh, 3, axis=1)
        r = jax.nn.sigmoid(i_r + h_r)
        z = jax.nn.sigmoid(i_z + h_z)
        n = jnp.tanh(i_n + r * h_n)
        h = (1.0 - z) * n + z * h
    ref = h.reshape(1, batch, nhid)

    assert ctx_h.shape == (1, batch, nhid)
    # Tolerance budgets for the bf16 MXU feeds (per perf review) vs the f32 reference.
    max_err = float(jnp.max(jnp.abs(ctx_h - ref)))
    assert jnp.allclose(ctx_h, ref, atol=2e-2, rtol=2e-2), max_err

    print("KERNEL_OK")
</pallas_src>

<mosaic_0001>
module attributes {stable_mosaic.version = 11 : i64} {
  func.func @_rnn_context_encoder_kernel(%arg0: i32, %arg1: memref<48x1xi32, #tpu.memory_space<vmem>>, %arg2: memref<16x32xf32, #tpu.memory_space<vmem>>, %arg3: memref<32x384xf32, #tpu.memory_space<vmem>>, %arg4: memref<128x384xf32, #tpu.memory_space<vmem>>, %arg5: memref<1x384xf32, #tpu.memory_space<vmem>>, %arg6: memref<1x384xf32, #tpu.memory_space<vmem>>, %arg7: memref<8x32xf32, #tpu.memory_space<vmem>>, %arg8: memref<48x384xf32, #tpu.memory_space<vmem>>) attributes {dimension_semantics = [#tpu.dimension_semantics<parallel>], iteration_bounds = array<i64: 2>, scalar_prefetch = 0 : i64, scratch_operands = 1 : i64, tpu.core_type = #tpu.core_type<tc>, window_params = [{transform_indices = @transform_0, window_bounds = array<i64: 48, 1>}, {pipeline_mode = #tpu.pipeline_mode<synchronous>, transform_indices = @transform_1, window_bounds = array<i64: 16, 32>}, {pipeline_mode = #tpu.pipeline_mode<synchronous>, transform_indices = @transform_2, window_bounds = array<i64: 32, 384>}, {pipeline_mode = #tpu.pipeline_mode<synchronous>, transform_indices = @transform_3, window_bounds = array<i64: 128, 384>}, {pipeline_mode = #tpu.pipeline_mode<synchronous>, transform_indices = @transform_4, window_bounds = array<i64: 1, 384>}, {pipeline_mode = #tpu.pipeline_mode<synchronous>, transform_indices = @transform_5, window_bounds = array<i64: 1, 384>}, {transform_indices = @transform_6, window_bounds = array<i64: 8, 32>}]} {
    %c0 = arith.constant 0 : index
    %c0_0 = arith.constant 0 : index
    %0 = vector.load %arg2[%c0, %c0_0] : memref<16x32xf32, #tpu.memory_space<vmem>>, vector<16x32xf32>
    %1 = arith.truncf %0 : vector<16x32xf32> to vector<16x32xbf16>
    %c0_1 = arith.constant 0 : index
    %c0_2 = arith.constant 0 : index
    %2 = vector.load %arg3[%c0_1, %c0_2] : memref<32x384xf32, #tpu.memory_space<vmem>>, vector<32x384xf32>
    %3 = arith.truncf %2 : vector<32x384xf32> to vector<32x384xbf16>
    %cst = arith.constant dense<0.000000e+00> : vector<16x384xf32>
    %4 = tpu.matmul %1, %3, %cst {dimension_numbers = #tpu.dot_dimension_numbers<[1], [0], [0], [1], [0, 0, 1, 1], [], []>} : vector<16x32xbf16>, vector<32x384xbf16>, vector<16x384xf32> -> vector<16x384xf32>
    %c0_3 = arith.constant 0 : index
    %c0_4 = arith.constant 0 : index
    %5 = vector.load %arg1[%c0_3, %c0_4] : memref<48x1xi32, #tpu.memory_space<vmem>>, vector<48x1xi32>
    %6 = tpu.iota {dimensions = array<i32: 1>} : vector<48x16xi32>
    %7 = vector.broadcast %5 : vector<48x1xi32> to vector<48x16xi32>
    %8 = arith.cmpi eq, %7, %6 : vector<48x16xi32>
    %cst_5 = arith.constant 1.000000e+00 : f32
    %cst_6 = arith.constant 0.000000e+00 : f32
    %9 = vector.broadcast %cst_5 : f32 to vector<48x16xf32>
    %10 = vector.broadcast %cst_6 : f32 to vector<48x16xf32>
    %11 = arith.select %8, %9, %10 : vector<48x16xi1>, vector<48x16xf32>
    %12 = arith.truncf %11 : vector<48x16xf32> to vector<48x16xbf16>
    %13 = arith.truncf %4 : vector<16x384xf32> to vector<16x384xbf16>
    %cst_7 = arith.constant dense<0.000000e+00> : vector<48x384xf32>
    %14 = tpu.matmul %12, %13, %cst_7 {dimension_numbers = #tpu.dot_dimension_numbers<[1], [0], [0], [1], [0, 0, 1, 1], [], []>} : vector<48x16xbf16>, vector<16x384xbf16>, vector<48x384xf32> -> vector<48x384xf32>
    %c0_8 = arith.constant 0 : index
    %c0_9 = arith.constant 0 : index
    %15 = vector.load %arg5[%c0_8, %c0_9] : memref<1x384xf32, #tpu.memory_space<vmem>>, vector<1x384xf32>
    %16 = vector.broadcast %15 : vector<1x384xf32> to vector<48x384xf32>
    %17 = arith.addf %14, %16 : vector<48x384xf32>
    %c0_10 = arith.constant 0 : index
    %c0_11 = arith.constant 0 : index
    %18 = vector.load %arg8[%c0_10, %c0_11] : memref<48x384xf32, #tpu.memory_space<vmem>>, vector<48x384xf32>
    tpu.vector_store %arg8[%c0_10, %c0_11], %17 {strides = array<i32>} : memref<48x384xf32, #tpu.memory_space<vmem>>, vector<48x384xf32>,
    %c0_12 = arith.constant 0 : index
    %c0_13 = arith.constant 0 : index
    %19 = vector.load %arg4[%c0_12, %c0_13] : memref<128x384xf32, #tpu.memory_space<vmem>>, vector<128x384xf32>
    %20 = arith.truncf %19 : vector<128x384xf32> to vector<128x384xbf16>
    %c0_14 = arith.constant 0 : index
    %c0_15 = arith.constant 0 : index
    %21 = vector.load %arg6[%c0_14, %c0_15] : memref<1x384xf32, #tpu.memory_space<vmem>>, vector<1x384xf32>
    %22 = vector.shape_cast %21 : vector<1x384xf32> to vector<1x384xf32>
    %23 = vector.broadcast %22 : vector<1x384xf32> to vector<8x384xf32>
    %cst_16 = arith.constant 0.000000e+00 : f32
    %24 = vector.broadcast %cst_16 : f32 to vector<8x128xf32>
    %c0_i32 = arith.constant 0 : i32
    %c8_i32 = arith.constant 8 : i32
    %25 = arith.muli %c0_i32, %c8_i32 : i32
    %26 = tpu.assume_multiple %25, 8 : i32
    %27 = arith.index_cast %26 : i32 to index
    %c0_17 = arith.constant 0 : index
    %28 = vector.load %arg8[%27, %c0_17] : memref<48x384xf32, #tpu.memory_space<vmem>>, vector<8x384xf32>
    %29 = arith.truncf %24 : vector<8x128xf32> to vector<8x128xbf16>
    %cst_18 = arith.constant dense<0.000000e+00> : vector<8x384xf32>
    %30 = tpu.matmul %29, %20, %cst_18 {dimension_numbers = #tpu.dot_dimension_numbers<[1], [0], [0], [1], [0, 0, 1, 1], [], []>} : vector<8x128xbf16>, vector<128x384xbf16>, vector<8x384xf32> -> vector<8x384xf32>
    %31 = arith.addf %30, %23 : vector<8x384xf32>
    %32 = vector.extract_strided_slice %28 {offsets = [0, 0], sizes = [8, 128], strides = [1, 1]} : vector<8x384xf32> to vector<8x128xf32>
    %33 = vector.extract_strided_slice %31 {offsets = [0, 0], sizes = [8, 128], strides = [1, 1]} : vector<8x384xf32> to vector<8x128xf32>
    %34 = arith.addf %32, %33 : vector<8x128xf32>
    %35 = arith.negf %34 : vector<8x128xf32>
    %36 = math.exp %35 : vector<8x128xf32>
    %cst_19 = arith.constant 1.000000e+00 : f32
    %37 = vector.broadcast %cst_19 : f32 to vector<8x128xf32>
    %38 = arith.addf %37, %36 : vector<8x128xf32>
    %39 = arith.divf %37, %38 : vector<8x128xf32>
    %40 = vector.extract_strided_slice %28 {offsets = [0, 128], sizes = [8, 128], strides = [1, 1]} : vector<8x384xf32> to vector<8x128xf32>
    %41 = vector.extract_strided_slice %31 {offsets = [0, 128], sizes = [8, 128], strides = [1, 1]} : vector<8x384xf32> to vector<8x128xf32>
    %42 = arith.addf %40, %41 : vector<8x128xf32>
    %43 = arith.negf %42 : vector<8x128xf32>
    %44 = math.exp %43 : vector<8x128xf32>
    %cst_20 = arith.constant 1.000000e+00 : f32
    %45 = vector.broadcast %cst_20 : f32 to vector<8x128xf32>
    %46 = arith.addf %45, %44 : vector<8x128xf32>
    %47 = arith.divf %45, %46 : vector<8x128xf32>
    %48 = vector.extract_strided_slice %28 {offsets = [0, 256], sizes = [8, 128], strides = [1, 1]} : vector<8x384xf32> to vector<8x128xf32>
    %49 = vector.extract_strided_slice %31 {offsets = [0, 256], sizes = [8, 128], strides = [1, 1]} : vector<8x384xf32> to vector<8x128xf32>
    %50 = arith.mulf %39, %49 : vector<8x128xf32>
    %51 = arith.addf %48, %50 : vector<8x128xf32>
    %52 = math.tanh %51 : vector<8x128xf32>
    %cst_21 = arith.constant 1.000000e+00 : f32
    %53 = vector.broadcast %cst_21 : f32 to vector<8x128xf32>
    %54 = arith.subf %53, %47 : vector<8x128xf32>
    %55 = arith.mulf %54, %52 : vector<8x128xf32>
    %56 = arith.mulf %47, %24 : vector<8x128xf32>
    %57 = arith.addf %55, %56 : vector<8x128xf32>
    %c1_i32 = arith.constant 1 : i32
    %c8_i32_22 = arith.constant 8 : i32
    %58 = arith.muli %c1_i32, %c8_i32_22 : i32
    %59 = tpu.assume_multiple %58, 8 : i32
    %60 = arith.index_cast %59 : i32 to index
    %c0_23 = arith.constant 0 : index
    %61 = vector.load %arg8[%60, %c0_23] : memref<48x384xf32, #tpu.memory_space<vmem>>, vector<8x384xf32>
    %62 = arith.truncf %57 : vector<8x128xf32> to vector<8x128xbf16>
    %cst_24 = arith.constant dense<0.000000e+00> : vector<8x384xf32>
    %63 = tpu.matmul %62, %20, %cst_24 {dimension_numbers = #tpu.dot_dimension_numbers<[1], [0], [0], [1], [0, 0, 1, 1], [], []>} : vector<8x128xbf16>, vector<128x384xbf16>, vector<8x384xf32> -> vector<8x384xf32>
    %64 = arith.addf %63, %23 : vector<8x384xf32>
    %65 = vector.extract_strided_slice %61 {offsets = [0, 0], sizes = [8, 128], strides = [1, 1]} : vector<8x384xf32> to vector<8x128xf32>
    %66 = vector.extract_strided_slice %64 {offsets = [0, 0], sizes = [8, 128], strides = [1, 1]} : vector<8x384xf32> to vector<8x128xf32>
    %67 = arith.addf %65, %66 : vector<8x128xf32>
    %68 = arith.negf %67 : vector<8x128xf32>
    %69 = math.exp %68 : vector<8x128xf32>
    %cst_25 = arith.constant 1.000000e+00 : f32
    %70 = vector.broadcast %cst_25 : f32 to vector<8x128xf32>
    %71 = arith.addf %70, %69 : vector<8x128xf32>
    %72 = arith.divf %70, %71 : vector<8x128xf32>
    %73 = vector.extract_strided_slice %61 {offsets = [0, 128], sizes = [8, 128], strides = [1, 1]} : vector<8x384xf32> to vector<8x128xf32>
    %74 = vector.extract_strided_slice %64 {offsets = [0, 128], sizes = [8, 128], strides = [1, 1]} : vector<8x384xf32> to vector<8x128xf32>
    %75 = arith.addf %73, %74 : vector<8x128xf32>
    %76 = arith.negf %75 : vector<8x128xf32>
    %77 = math.exp %76 : vector<8x128xf32>
    %cst_26 = arith.constant 1.000000e+00 : f32
    %78 = vector.broadcast %cst_26 : f32 to vector<8x128xf32>
    %79 = arith.addf %78, %77 : vector<8x128xf32>
    %80 = arith.divf %78, %79 : vector<8x128xf32>
    %81 = vector.extract_strided_slice %61 {offsets = [0, 256], sizes = [8, 128], strides = [1, 1]} : vector<8x384xf32> to vector<8x128xf32>
    %82 = vector.extract_strided_slice %64 {offsets = [0, 256], sizes = [8, 128], strides = [1, 1]} : vector<8x384xf32> to vector<8x128xf32>
    %83 = arith.mulf %72, %82 : vector<8x128xf32>
    %84 = arith.addf %81, %83 : vector<8x128xf32>
    %85 = math.tanh %84 : vector<8x128xf32>
    %cst_27 = arith.constant 1.000000e+00 : f32
    %86 = vector.broadcast %cst_27 : f32 to vector<8x128xf32>
    %87 = arith.subf %86, %80 : vector<8x128xf32>
    %88 = arith.mulf %87, %85 : vector<8x128xf32>
    %89 = arith.mulf %80, %57 : vector<8x128xf32>
    %90 = arith.addf %88, %89 : vector<8x128xf32>
    %c2_i32 = arith.constant 2 : i32
    %c8_i32_28 = arith.constant 8 : i32
    %91 = arith.muli %c2_i32, %c8_i32_28 : i32
    %92 = tpu.assume_multiple %91, 8 : i32
    %93 = arith.index_cast %92 : i32 to index
    %c0_29 = arith.constant 0 : index
    %94 = vector.load %arg8[%93, %c0_29] : memref<48x384xf32, #tpu.memory_space<vmem>>, vector<8x384xf32>
    %95 = arith.truncf %90 : vector<8x128xf32> to vector<8x128xbf16>
    %cst_30 = arith.constant dense<0.000000e+00> : vector<8x384xf32>
    %96 = tpu.matmul %95, %20, %cst_30 {dimension_numbers = #tpu.dot_dimension_numbers<[1], [0], [0], [1], [0, 0, 1, 1], [], []>} : vector<8x128xbf16>, vector<128x384xbf16>, vector<8x384xf32> -> vector<8x384xf32>
    %97 = arith.addf %96, %23 : vector<8x384xf32>
    %98 = vector.extract_strided_slice %94 {offsets = [0, 0], sizes = [8, 128], strides = [1, 1]} : vector<8x384xf32> to vector<8x128xf32>
    %99 = vector.extract_strided_slice %97 {offsets = [0, 0], sizes = [8, 128], strides = [1, 1]} : vector<8x384xf32> to vector<8x128xf32>
    %100 = arith.addf %98, %99 : vector<8x128xf32>
    %101 = arith.negf %100 : vector<8x128xf32>
    %102 = math.exp %101 : vector<8x128xf32>
    %cst_31 = arith.constant 1.000000e+00 : f32
    %103 = vector.broadcast %cst_31 : f32 to vector<8x128xf32>
    %104 = arith.addf %103, %102 : vector<8x128xf32>
    %105 = arith.divf %103, %104 : vector<8x128xf32>
    %106 = vector.extract_strided_slice %94 {offsets = [0, 128], sizes = [8, 128], strides = [1, 1]} : vector<8x384xf32> to vector<8x128xf32>
    %107 = vector.extract_strided_slice %97 {offsets = [0, 128], sizes = [8, 128], strides = [1, 1]} : vector<8x384xf32> to vector<8x128xf32>
    %108 = arith.addf %106, %107 : vector<8x128xf32>
    %109 = arith.negf %108 : vector<8x128xf32>
    %110 = math.exp %109 : vector<8x128xf32>
    %cst_32 = arith.constant 1.000000e+00 : f32
    %111 = vector.broadcast %cst_32 : f32 to vector<8x128xf32>
    %112 = arith.addf %111, %110 : vector<8x128xf32>
    %113 = arith.divf %111, %112 : vector<8x128xf32>
    %114 = vector.extract_strided_slice %94 {offsets = [0, 256], sizes = [8, 128], strides = [1, 1]} : vector<8x384xf32> to vector<8x128xf32>
    %115 = vector.extract_strided_slice %97 {offsets = [0, 256], sizes = [8, 128], strides = [1, 1]} : vector<8x384xf32> to vector<8x128xf32>
    %116 = arith.mulf %105, %115 : vector<8x128xf32>
    %117 = arith.addf %114, %116 : vector<8x128xf32>
    %118 = math.tanh %117 : vector<8x128xf32>
    %cst_33 = arith.constant 1.000000e+00 : f32
    %119 = vector.broadcast %cst_33 : f32 to vector<8x128xf32>
    %120 = arith.subf %119, %113 : vector<8x128xf32>
    %121 = arith.mulf %120, %118 : vector<8x128xf32>
    %122 = arith.mulf %113, %90 : vector<8x128xf32>
    %123 = arith.addf %121, %122 : vector<8x128xf32>
    %c3_i32 = arith.constant 3 : i32
    %c8_i32_34 = arith.constant 8 : i32
    %124 = arith.muli %c3_i32, %c8_i32_34 : i32
    %125 = tpu.assume_multiple %124, 8 : i32
    %126 = arith.index_cast %125 : i32 to index
    %c0_35 = arith.constant 0 : index
    %127 = vector.load %arg8[%126, %c0_35] : memref<48x384xf32, #tpu.memory_space<vmem>>, vector<8x384xf32>
    %128 = arith.truncf %123 : vector<8x128xf32> to vector<8x128xbf16>
    %cst_36 = arith.constant dense<0.000000e+00> : vector<8x384xf32>
    %129 = tpu.matmul %128, %20, %cst_36 {dimension_numbers = #tpu.dot_dimension_numbers<[1], [0], [0], [1], [0, 0, 1, 1], [], []>} : vector<8x128xbf16>, vector<128x384xbf16>, vector<8x384xf32> -> vector<8x384xf32>
    %130 = arith.addf %129, %23 : vector<8x384xf32>
    %131 = vector.extract_strided_slice %127 {offsets = [0, 0], sizes = [8, 128], strides = [1, 1]} : vector<8x384xf32> to vector<8x128xf32>
    %132 = vector.extract_strided_slice %130 {offsets = [0, 0], sizes = [8, 128], strides = [1, 1]} : vector<8x384xf32> to vector<8x128xf32>
    %133 = arith.addf %131, %132 : vector<8x128xf32>
    %134 = arith.negf %133 : vector<8x128xf32>
    %135 = math.exp %134 : vector<8x128xf32>
    %cst_37 = arith.constant 1.000000e+00 : f32
    %136 = vector.broadcast %cst_37 : f32 to vector<8x128xf32>
    %137 = arith.addf %136, %135 : vector<8x128xf32>
    %138 = arith.divf %136, %137 : vector<8x128xf32>
    %139 = vector.extract_strided_slice %127 {offsets = [0, 128], sizes = [8, 128], strides = [1, 1]} : vector<8x384xf32> to vector<8x128xf32>
    %140 = vector.extract_strided_slice %130 {offsets = [0, 128], sizes = [8, 128], strides = [1, 1]} : vector<8x384xf32> to vector<8x128xf32>
    %141 = arith.addf %139, %140 : vector<8x128xf32>
    %142 = arith.negf %141 : vector<8x128xf32>
    %143 = math.exp %142 : vector<8x128xf32>
    %cst_38 = arith.constant 1.000000e+00 : f32
    %144 = vector.broadcast %cst_38 : f32 to vector<8x128xf32>
    %145 = arith.addf %144, %143 : vector<8x128xf32>
    %146 = arith.divf %144, %145 : vector<8x128xf32>
    %147 = vector.extract_strided_slice %127 {offsets = [0, 256], sizes = [8, 128], strides = [1, 1]} : vector<8x384xf32> to vector<8x128xf32>
    %148 = vector.extract_strided_slice %130 {offsets = [0, 256], sizes = [8, 128], strides = [1, 1]} : vector<8x384xf32> to vector<8x128xf32>
    %149 = arith.mulf %138, %148 : vector<8x128xf32>
    %150 = arith.addf %147, %149 : vector<8x128xf32>
    %151 = math.tanh %150 : vector<8x128xf32>
    %cst_39 = arith.constant 1.000000e+00 : f32
    %152 = vector.broadcast %cst_39 : f32 to vector<8x128xf32>
    %153 = arith.subf %152, %146 : vector<8x128xf32>
    %154 = arith.mulf %153, %151 : vector<8x128xf32>
    %155 = arith.mulf %146, %123 : vector<8x128xf32>
    %156 = arith.addf %154, %155 : vector<8x128xf32>
    %c4_i32 = arith.constant 4 : i32
    %c8_i32_40 = arith.constant 8 : i32
    %157 = arith.muli %c4_i32, %c8_i32_40 : i32
    %158 = tpu.assume_multiple %157, 8 : i32
    %159 = arith.index_cast %158 : i32 to index
    %c0_41 = arith.constant 0 : index
    %160 = vector.load %arg8[%159, %c0_41] : memref<48x384xf32, #tpu.memory_space<vmem>>, vector<8x384xf32>
    %161 = arith.truncf %156 : vector<8x128xf32> to vector<8x128xbf16>
    %cst_42 = arith.constant dense<0.000000e+00> : vector<8x384xf32>
    %162 = tpu.matmul %161, %20, %cst_42 {dimension_numbers = #tpu.dot_dimension_numbers<[1], [0], [0], [1], [0, 0, 1, 1], [], []>} : vector<8x128xbf16>, vector<128x384xbf16>, vector<8x384xf32> -> vector<8x384xf32>
    %163 = arith.addf %162, %23 : vector<8x384xf32>
    %164 = vector.extract_strided_slice %160 {offsets = [0, 0], sizes = [8, 128], strides = [1, 1]} : vector<8x384xf32> to vector<8x128xf32>
    %165 = vector.extract_strided_slice %163 {offsets = [0, 0], sizes = [8, 128], strides = [1, 1]} : vector<8x384xf32> to vector<8x128xf32>
    %166 = arith.addf %164, %165 : vector<8x128xf32>
    %167 = arith.negf %166 : vector<8x128xf32>
    %168 = math.exp %167 : vector<8x128xf32>
    %cst_43 = arith.constant 1.000000e+00 : f32
    %169 = vector.broadcast %cst_43 : f32 to vector<8x128xf32>
    %170 = arith.addf %169, %168 : vector<8x128xf32>
    %171 = arith.divf %169, %170 : vector<8x128xf32>
    %172 = vector.extract_strided_slice %160 {offsets = [0, 128], sizes = [8, 128], strides = [1, 1]} : vector<8x384xf32> to vector<8x128xf32>
    %173 = vector.extract_strided_slice %163 {offsets = [0, 128], sizes = [8, 128], strides = [1, 1]} : vector<8x384xf32> to vector<8x128xf32>
    %174 = arith.addf %172, %173 : vector<8x128xf32>
    %175 = arith.negf %174 : vector<8x128xf32>
    %176 = math.exp %175 : vector<8x128xf32>
    %cst_44 = arith.constant 1.000000e+00 : f32
    %177 = vector.broadcast %cst_44 : f32 to vector<8x128xf32>
    %178 = arith.addf %177, %176 : vector<8x128xf32>
    %179 = arith.divf %177, %178 : vector<8x128xf32>
    %180 = vector.extract_strided_slice %160 {offsets = [0, 256], sizes = [8, 128], strides = [1, 1]} : vector<8x384xf32> to vector<8x128xf32>
    %181 = vector.extract_strided_slice %163 {offsets = [0, 256], sizes = [8, 128], strides = [1, 1]} : vector<8x384xf32> to vector<8x128xf32>
    %182 = arith.mulf %171, %181 : vector<8x128xf32>
    %183 = arith.addf %180, %182 : vector<8x128xf32>
    %184 = math.tanh %183 : vector<8x128xf32>
    %cst_45 = arith.constant 1.000000e+00 : f32
    %185 = vector.broadcast %cst_45 : f32 to vector<8x128xf32>
    %186 = arith.subf %185, %179 : vector<8x128xf32>
    %187 = arith.mulf %186, %184 : vector<8x128xf32>
    %188 = arith.mulf %179, %156 : vector<8x128xf32>
    %189 = arith.addf %187, %188 : vector<8x128xf32>
    %c5_i32 = arith.constant 5 : i32
    %c8_i32_46 = arith.constant 8 : i32
    %190 = arith.muli %c5_i32, %c8_i32_46 : i32
    %191 = tpu.assume_multiple %190, 8 : i32
    %192 = arith.index_cast %191 : i32 to index
    %c0_47 = arith.constant 0 : index
    %193 = vector.load %arg8[%192, %c0_47] : memref<48x384xf32, #tpu.memory_space<vmem>>, vector<8x384xf32>
    %194 = arith.truncf %189 : vector<8x128xf32> to vector<8x128xbf16>
    %cst_48 = arith.constant dense<0.000000e+00> : vector<8x384xf32>
    %195 = tpu.matmul %194, %20, %cst_48 {dimension_numbers = #tpu.dot_dimension_numbers<[1], [0], [0], [1], [0, 0, 1, 1], [], []>} : vector<8x128xbf16>, vector<128x384xbf16>, vector<8x384xf32> -> vector<8x384xf32>
    %196 = arith.addf %195, %23 : vector<8x384xf32>
    %197 = vector.extract_strided_slice %193 {offsets = [0, 0], sizes = [8, 128], strides = [1, 1]} : vector<8x384xf32> to vector<8x128xf32>
    %198 = vector.extract_strided_slice %196 {offsets = [0, 0], sizes = [8, 128], strides = [1, 1]} : vector<8x384xf32> to vector<8x128xf32>
    %199 = arith.addf %197, %198 : vector<8x128xf32>
    %200 = arith.negf %199 : vector<8x128xf32>
    %201 = math.exp %200 : vector<8x128xf32>
    %cst_49 = arith.constant 1.000000e+00 : f32
    %202 = vector.broadcast %cst_49 : f32 to vector<8x128xf32>
    %203 = arith.addf %202, %201 : vector<8x128xf32>
    %204 = arith.divf %202, %203 : vector<8x128xf32>
    %205 = vector.extract_strided_slice %193 {offsets = [0, 128], sizes = [8, 128], strides = [1, 1]} : vector<8x384xf32> to vector<8x128xf32>
    %206 = vector.extract_strided_slice %196 {offsets = [0, 128], sizes = [8, 128], strides = [1, 1]} : vector<8x384xf32> to vector<8x128xf32>
    %207 = arith.addf %205, %206 : vector<8x128xf32>
    %208 = arith.negf %207 : vector<8x128xf32>
    %209 = math.exp %208 : vector<8x128xf32>
    %cst_50 = arith.constant 1.000000e+00 : f32
    %210 = vector.broadcast %cst_50 : f32 to vector<8x128xf32>
    %211 = arith.addf %210, %209 : vector<8x128xf32>
    %212 = arith.divf %210, %211 : vector<8x128xf32>
    %213 = vector.extract_strided_slice %193 {offsets = [0, 256], sizes = [8, 128], strides = [1, 1]} : vector<8x384xf32> to vector<8x128xf32>
    %214 = vector.extract_strided_slice %196 {offsets = [0, 256], sizes = [8, 128], strides = [1, 1]} : vector<8x384xf32> to vector<8x128xf32>
    %215 = arith.mulf %204, %214 : vector<8x128xf32>
    %216 = arith.addf %213, %215 : vector<8x128xf32>
    %217 = math.tanh %216 : vector<8x128xf32>
    %cst_51 = arith.constant 1.000000e+00 : f32
    %218 = vector.broadcast %cst_51 : f32 to vector<8x128xf32>
    %219 = arith.subf %218, %212 : vector<8x128xf32>
    %220 = arith.mulf %219, %217 : vector<8x128xf32>
    %221 = arith.mulf %212, %189 : vector<8x128xf32>
    %222 = arith.addf %220, %221 : vector<8x128xf32>
    %c6_i32 = arith.constant 6 : i32
    %223 = vector.extract_strided_slice %222 {offsets = [0, 0], sizes = [8, 32], strides = [1, 1]} : vector<8x128xf32> to vector<8x32xf32>
    %c0_52 = arith.constant 0 : index
    %c0_53 = arith.constant 0 : index
    %224 = vector.load %arg7[%c0_52, %c0_53] : memref<8x32xf32, #tpu.memory_space<vmem>>, vector<8x32xf32>
    tpu.vector_store %arg7[%c0_52, %c0_53], %223 {strides = array<i32>} : memref<8x32xf32, #tpu.memory_space<vmem>>, vector<8x32xf32>,
    return
  }
  func.func @transform_0(%arg0: i32) -> (i32, i32) {
    %c0_i32 = arith.constant 0 : i32
    %c0_i32_0 = arith.constant 0 : i32
    return %arg0, %c0_i32 : i32, i32
  }
  func.func @transform_1(%arg0: i32) -> (i32, i32) {
    %c0_i32 = arith.constant 0 : i32
    %c0_i32_0 = arith.constant 0 : i32
    %c0_i32_1 = arith.constant 0 : i32
    return %c0_i32, %c0_i32_0 : i32, i32
  }
  func.func @transform_2(%arg0: i32) -> (i32, i32) {
    %c0_i32 = arith.constant 0 : i32
    %c0_i32_0 = arith.constant 0 : i32
    %c0_i32_1 = arith.constant 0 : i32
    return %c0_i32, %c0_i32_0 : i32, i32
  }
  func.func @transform_3(%arg0: i32) -> (i32, i32) {
    %c0_i32 = arith.constant 0 : i32
    %c0_i32_0 = arith.constant 0 : i32
    %c0_i32_1 = arith.constant 0 : i32
    return %c0_i32, %c0_i32_0 : i32, i32
  }
  func.func @transform_4(%arg0: i32) -> (i32, i32) {
    %c0_i32 = arith.constant 0 : i32
    %c0_i32_0 = arith.constant 0 : i32
    %c0_i32_1 = arith.constant 0 : i32
    return %c0_i32, %c0_i32_0 : i32, i32
  }
  func.func @transform_5(%arg0: i32) -> (i32, i32) {
    %c0_i32 = arith.constant 0 : i32
    %c0_i32_0 = arith.constant 0 : i32
    %c0_i32_1 = arith.constant 0 : i32
    return %c0_i32, %c0_i32_0 : i32, i32
  }
  func.func @transform_6(%arg0: i32) -> (i32, i32) {
    %c0_i32 = arith.constant 0 : i32
    %c0_i32_0 = arith.constant 0 : i32
    return %arg0, %c0_i32 : i32, i32
  }
}

</mosaic_0001>

<llo_original>
// kernel: tpu_custom_call.1
$region0: #{tpu_custom_call.1}
  #allocation0 [shape = 'u32[]', space=smem, size = 0x4, offset = 0x4, fixed_abs, tag = 'smem constant byte address 0x4 - core index']
  #allocation1 [shape = 'u32[144,128]{1,0:T(1,128)}', space=vmem, size = 0x12000, scoped, tag = 'internal scratch']
  #allocation2 [shape = 'f32[48,384]{1,0:T(8,128)}', space=vmem, size = 0x12000, scoped, tag = 'scratch operand']
  %s0 = inlined_call_operand.vmem [shape: s32[96,1], index: 0, kind: input, shape index: {}]
  %s1 = inlined_call_operand.hbm [shape: f32[16,32], index: 1, kind: input, shape index: {}]
  %s2 = inlined_call_operand.vmem [shape: f32[32,384], index: 2, kind: input, shape index: {}]
  %s3 = inlined_call_operand.hbm [shape: f32[128,384], index: 3, kind: input, shape index: {}]
  %s4 = inlined_call_operand.vmem [shape: f32[1,384], index: 4, kind: input, shape index: {}]
  %s5 = inlined_call_operand.vmem [shape: f32[1,384], index: 5, kind: input, shape index: {}]
  %s6 = inlined_call_operand.hbm [shape: f32[16,32], index: 6, kind: output, shape index: {}]
  %s7 = sld [smem:[#allocation0]]
  $region65: #{tpu_custom_call.1} parent=0
    _
  %s9 = ssub.s32 1, %s7
  %s10 = scalar_select 0, %s9, %s7
  $region1: #{tpu_custom_call.1} parent=0
    #allocation3 [shape = 'u8[8192]{0}', space=vmem, size = 0x2000, scoped, tag = 'input window, operand 1, single buffered']
    #allocation4 [shape = 's32[2]{0}', space=sflag, size = 0x8, scoped, tag = 'scoped memory for tpu_custom_call.1']
    #allocation5 [shape = 's32[2]{0}', space=sflag, size = 0x8, scoped, tag = 'scoped memory for tpu_custom_call.1']
    #allocation6 [shape = 'u8[196608]{0}', space=vmem, size = 0x30000, scoped, tag = 'input window, operand 3, single buffered']
    #allocation7 [shape = 's32[1]{0}', space=sflag, size = 0x4, scoped, tag = 'scoped memory for tpu_custom_call.1']
    #allocation8 [shape = 'u8[8192]{0}', space=vmem, size = 0x2000, scoped, tag = 'output window, operand 0']
    %11 = vsyncpa [#allocation4], 0
    %12 = vsyncpa [#allocation7], 0
    %13 = vsyncpa [#allocation5], 0
    %s14 = scalar_lea.sflag [#allocation5], 1
    %15 = vsyncpa %s14, 0
    loop: start=0, step=1, limit=4
    $region2: #{tpu_custom_call.1} parent=1 // loop_pre_header
      _
    $region3: #{tpu_custom_call.1} parent=1 // loop_header
      %s17 = sphi 0, %s21
      %p18 = scmp.ge.s32.totalorder %s17, 4
      %s27 = sphi 0, %s29
      %s30 = sphi 0, %s27
      %s31 = sphi 0, %s30
      %s47 = sphi 0, %s31
      %s51 = sphi 0, %s51
      %s53 = sphi 0, %s51
      %s54 = sphi 0, %s53
      %s68 = sphi 0, %s54
      %s72 = sphi 0, %s72
      %s74 = sphi 0, %s72
      %s75 = sphi 0, %s74
      %s89 = sphi 0, %s75
      %s93 = sphi 0, %s93
      %s95 = sphi 0, %s93
      %s96 = sphi 0, %s95
      %s110 = sphi 0, %s96
      %s114 = sphi 0, %s114
      %s116 = sphi 0, %s114
      %s117 = sphi 0, %s116
      %s131 = sphi 0, %s117
      %s135 = sphi 0, %s135
      %s137 = sphi 0, %s135
      %s138 = sphi 0, %s137
      %s152 = sphi 0, %s138
      %s158 = sphi 0, %s160
      %s161 = sphi 0, %s158
      %s162 = sphi 0, %s161
      %s178 = sphi 0, %s162
    $region4: #{tpu_custom_call.1} parent=1 // loop_header_branch
      %20 = sbr.rel (%p18) target = $region8
    $region5: #{tpu_custom_call.1} parent=1 // loop_body
      %s22 = ssub.s32 %s17, 1
      %s23 = ssub.s32 %s17, 2
      %s24 = sadd.s32 %s17, 1
      %s25 = ssub.s32 %s17, %s24
      %p26 = scmp.eq.s32.totalorder %s25, 0
      %s28 = sadd.s32 %s27, 1
      %s29 = scalar_select %p26, %s27, %s28
      %p32 = pneg %p26
      %p33 = scmp.eq.s32.totalorder %s17, 1
      %p34 = por %p32, %p33
      %p35 = scmp.ne.s32.totalorder %s27, %s30
      %p36 = scmp.eq.s32.totalorder %s17, 0
      %p37 = por %p35, %p36
      %p38 = scmp.ne.s32.totalorder %s27, %s30
      %p39 = scmp.eq.s32.totalorder %s22, 1
      %p40 = por %p38, %p39
      %p41 = scmp.ne.s32.totalorder %s30, %s31
      %p42 = scmp.eq.s32.totalorder %s22, 0
      %p43 = por %p41, %p42
      %p44 = scmp.ne.s32.totalorder %s30, %s31
      %p45 = scmp.eq.s32.totalorder %s23, 1
      %p46 = por %p44, %p45
      %p48 = scmp.ne.s32.totalorder %s31, %s47
      %p49 = scmp.eq.s32.totalorder %s23, 0
      %p50 = por %p48, %p49
      %s52 = sadd.s32 %s51, 1
      %p55 = scmp.eq.s32.totalorder %s17, 1
      %p56 = scmp.ne.s32.totalorder %s51, %s53
      %p57 = scmp.eq.s32.totalorder %s17, 0
      %p58 = por %p56, %p57
      %p59 = scmp.ne.s32.totalorder %s51, %s53
      %p60 = scmp.eq.s32.totalorder %s22, 1
      %p61 = por %p59, %p60
      %p62 = scmp.ne.s32.totalorder %s53, %s54
      %p63 = scmp.eq.s32.totalorder %s22, 0
      %p64 = por %p62, %p63
      %p65 = scmp.ne.s32.totalorder %s53, %s54
      %p66 = scmp.eq.s32.totalorder %s23, 1
      %p67 = por %p65, %p66
      %p69 = scmp.ne.s32.totalorder %s54, %s68
      %p70 = scmp.eq.s32.totalorder %s23, 0
      %p71 = por %p69, %p70
      %s73 = sadd.s32 %s72, 1
      %p76 = scmp.eq.s32.totalorder %s17, 1
      %p77 = scmp.ne.s32.totalorder %s72, %s74
      %p78 = scmp.eq.s32.totalorder %s17, 0
      %p79 = por %p77, %p78
      %p80 = scmp.ne.s32.totalorder %s72, %s74
      %p81 = scmp.eq.s32.totalorder %s22, 1
      %p82 = por %p80, %p81
      %p83 = scmp.ne.s32.totalorder %s74, %s75
      %p84 = scmp.eq.s32.totalorder %s22, 0
      %p85 = por %p83, %p84
      %p86 = scmp.ne.s32.totalorder %s74, %s75
      %p87 = scmp.eq.s32.totalorder %s23, 1
      %p88 = por %p86, %p87
      %p90 = scmp.ne.s32.totalorder %s75, %s89
      %p91 = scmp.eq.s32.totalorder %s23, 0
      %p92 = por %p90, %p91
      %s94 = sadd.s32 %s93, 1
      %p97 = scmp.eq.s32.totalorder %s17, 1
      %p98 = scmp.ne.s32.totalorder %s93, %s95
      %p99 = scmp.eq.s32.totalorder %s17, 0
      %p100 = por %p98, %p99
      %p101 = scmp.ne.s32.totalorder %s93, %s95
      %p102 = scmp.eq.s32.totalorder %s22, 1
      %p103 = por %p101, %p102
      %p104 = scmp.ne.s32.totalorder %s95, %s96
      %p105 = scmp.eq.s32.totalorder %s22, 0
      %p106 = por %p104, %p105
      %p107 = scmp.ne.s32.totalorder %s95, %s96
      %p108 = scmp.eq.s32.totalorder %s23, 1
      %p109 = por %p107, %p108
      %p111 = scmp.ne.s32.totalorder %s96, %s110
      %p112 = scmp.eq.s32.totalorder %s23, 0
      %p113 = por %p111, %p112
      %s115 = sadd.s32 %s114, 1
      %p118 = scmp.eq.s32.totalorder %s17, 1
      %p119 = scmp.ne.s32.totalorder %s114, %s116
      %p120 = scmp.eq.s32.totalorder %s17, 0
      %p121 = por %p119, %p120
      %p122 = scmp.ne.s32.totalorder %s114, %s116
      %p123 = scmp.eq.s32.totalorder %s22, 1
      %p124 = por %p122, %p123
      %p125 = scmp.ne.s32.totalorder %s116, %s117
      %p126 = scmp.eq.s32.totalorder %s22, 0
      %p127 = por %p125, %p126
      %p128 = scmp.ne.s32.totalorder %s116, %s117
      %p129 = scmp.eq.s32.totalorder %s23, 1
      %p130 = por %p128, %p129
      %p132 = scmp.ne.s32.totalorder %s117, %s131
      %p133 = scmp.eq.s32.totalorder %s23, 0
      %p134 = por %p132, %p133
      %s136 = sadd.s32 %s135, 1
      %p139 = scmp.eq.s32.totalorder %s17, 1
      %p140 = scmp.ne.s32.totalorder %s135, %s137
      %p141 = scmp.eq.s32.totalorder %s17, 0
      %p142 = por %p140, %p141
      %p143 = scmp.ne.s32.totalorder %s135, %s137
      %p144 = scmp.eq.s32.totalorder %s22, 1
      %p145 = por %p143, %p144
      %p146 = scmp.ne.s32.totalorder %s137, %s138
      %p147 = scmp.eq.s32.totalorder %s22, 0
      %p148 = por %p146, %p147
      %p149 = scmp.ne.s32.totalorder %s137, %s138
      %p150 = scmp.eq.s32.totalorder %s23, 1
      %p151 = por %p149, %p150
      %p153 = scmp.ne.s32.totalorder %s138, %s152
      %p154 = scmp.eq.s32.totalorder %s23, 0
      %p155 = por %p153, %p154
      %s156 = ssub.s32 %s17, %s24
      %p157 = scmp.eq.s32.totalorder %s156, 0
      %s159 = sadd.s32 %s158, 1
      %s160 = scalar_select %p157, %s158, %s159
      %p163 = pneg %p157
      %p164 = scmp.eq.s32.totalorder %s17, 1
      %p165 = por %p163, %p164
      %p166 = scmp.ne.s32.totalorder %s158, %s161
      %p167 = scmp.eq.s32.totalorder %s17, 0
      %p168 = por %p166, %p167
      %p169 = scmp.ne.s32.totalorder %s158, %s161
      %p170 = scmp.eq.s32.totalorder %s22, 1
      %p171 = por %p169, %p170
      %p172 = scmp.ne.s32.totalorder %s161, %s162
      %p173 = scmp.eq.s32.totalorder %s22, 0
      %p174 = por %p172, %p173
      %p175 = scmp.ne.s32.totalorder %s161, %s162
      %p176 = scmp.eq.s32.totalorder %s23, 1
      %p177 = por %p175, %p176
      %p179 = scmp.ne.s32.totalorder %s162, %s178
      %p180 = scmp.eq.s32.totalorder %s23, 0
      %p181 = por %p179, %p180
      %p182 = scmp.le.s32.totalorder 1, %s17
      %p183 = scmp.lt.s32.totalorder %s17, 3
      %p184 = pnand %p182, %p183
      %p185 = pneg %p184
      // Predicated region
      $region9: #{tpu_custom_call.1} parent=5 // pred_check
        _
      $region10: #{tpu_custom_call.1} parent=5 // pred_check_branch
        %187 = sbr.rel (%p184) target = $region12
      $region11: #{tpu_custom_call.1} parent=5 // pred_region
        %s188 = ssub.s32 %s17, 1
        // Predicated region
        $region13: #{tpu_custom_call.1} parent=11 // pred_check
          %p189 = pneg %p64
        $region14: #{tpu_custom_call.1} parent=11 // pred_check_branch
          %191 = sbr.rel (%p189) target = $region16
        $region15: #{tpu_custom_call.1} parent=11 // pred_region
          %s193 = ssub.s32 256, 256
          %194 = vsyncadd [#allocation4], %s193
          %s195 = sshll.u32 [#allocation3], 4
          %s196 = int_to_ptr.vmem [resolvable:$true] %s195
          %201 = dma.hbm_to_vmem [thread:$0]  %s1, 256, %s196, [#allocation4], 128, 128, 8
        $region16: #{tpu_custom_call.1} parent=11 // pred_fallthru
          _
        // Predicated region
        $region17: #{tpu_custom_call.1} parent=11 // pred_check
          %p202 = pneg %p85
        $region18: #{tpu_custom_call.1} parent=11 // pred_check_branch
          %204 = sbr.rel (%p202) target = $region20
        $region19: #{tpu_custom_call.1} parent=11 // pred_region
          _
        $region20: #{tpu_custom_call.1} parent=11 // pred_fallthru
          _
        // Predicated region
        $region21: #{tpu_custom_call.1} parent=11 // pred_check
          %p205 = pneg %p106
        $region22: #{tpu_custom_call.1} parent=11 // pred_check_branch
          %207 = sbr.rel (%p205) target = $region24
        $region23: #{tpu_custom_call.1} parent=11 // pred_region
          %s209 = ssub.s32 6144, 6144
          %210 = vsyncadd [#allocation7], %s209
          %s211 = sshll.u32 [#allocation6], 4
          %s212 = int_to_ptr.vmem [resolvable:$true] %s211
          %217 = dma.hbm_to_vmem [thread:$0]  %s3, 6144, %s212, [#allocation7], 384, 384, 24
        $region24: #{tpu_custom_call.1} parent=11 // pred_fallthru
          _
        // Predicated region
        $region25: #{tpu_custom_call.1} parent=11 // pred_check
          %p218 = pneg %p127
        $region26: #{tpu_custom_call.1} parent=11 // pred_check_branch
          %220 = sbr.rel (%p218) target = $region28
        $region27: #{tpu_custom_call.1} parent=11 // pred_region
          _
        $region28: #{tpu_custom_call.1} parent=11 // pred_fallthru
          _
        // Predicated region
        $region29: #{tpu_custom_call.1} parent=11 // pred_check
          %p221 = pneg %p148
        $region30: #{tpu_custom_call.1} parent=11 // pred_check_branch
          %223 = sbr.rel (%p221) target = $region32
        $region31: #{tpu_custom_call.1} parent=11 // pred_region
          _
        $region32: #{tpu_custom_call.1} parent=11 // pred_fallthru
          _
      $region12: #{tpu_custom_call.1} parent=5 // pred_fallthru
        _
      %p224 = scmp.lt.s32.totalorder %s17, 2
      // Predicated region
      $region33: #{tpu_custom_call.1} parent=5 // pred_check
        %p225 = pneg %p224
      $region34: #{tpu_custom_call.1} parent=5 // pred_check_branch
        %227 = sbr.rel (%p225) target = $region36
      $region35: #{tpu_custom_call.1} parent=5 // pred_region
        // Predicated region
        $region37: #{tpu_custom_call.1} parent=35 // pred_check
          %p228 = pneg %p37
        $region38: #{tpu_custom_call.1} parent=35 // pred_check_branch
          %230 = sbr.rel (%p228) target = $region40
        $region39: #{tpu_custom_call.1} parent=35 // pred_region
          %s231 = smul.u32 6, %s17
          %p232 = scmp.lt.s32.totalorder %s231, 11
          %s233 = scalar_select %p232, %s231, 11
          %s234 = smul.addr %s233, 8
          %s235 = scalar_lea.vmem %s0, %s234
          %s236 = smul.u32 6, %s17
        $region40: #{tpu_custom_call.1} parent=35 // pred_fallthru
          _
      $region36: #{tpu_custom_call.1} parent=5 // pred_fallthru
        _
      %p237 = scmp.le.s32.totalorder 1, %s17
      %p238 = scmp.lt.s32.totalorder %s17, 3
      %p239 = pnand %p237, %p238
      %p240 = pneg %p239
      // Predicated region
      $region41: #{tpu_custom_call.1} parent=5 // pred_check
        _
      $region42: #{tpu_custom_call.1} parent=5 // pred_check_branch
        %242 = sbr.rel (%p239) target = $region44
      $region43: #{tpu_custom_call.1} parent=5 // pred_region
        %s243 = ssub.s32 %s17, 1
        // Predicated region
        $region45: #{tpu_custom_call.1} parent=43 // pred_check
          %p244 = pneg %p64
        $region46: #{tpu_custom_call.1} parent=43 // pred_check_branch
          %246 = sbr.rel (%p244) target = $region48
        $region47: #{tpu_custom_call.1} parent=43 // pred_region
          %247 = dma.done [#allocation4], 256
        $region48: #{tpu_custom_call.1} parent=43 // pred_fallthru
          _
        // Predicated region
        $region49: #{tpu_custom_call.1} parent=43 // pred_check
          %p248 = pneg %p106
        $region50: #{tpu_custom_call.1} parent=43 // pred_check_branch
          %250 = sbr.rel (%p248) target = $region52
        $region51: #{tpu_custom_call.1} parent=43 // pred_region
          %251 = dma.done [#allocation7], 6144
        $region52: #{tpu_custom_call.1} parent=43 // pred_fallthru
          _
        %s252 = smul.u32 6, %s22
        %p253 = scmp.lt.s32.totalorder %s252, 11
        %s254 = scalar_select %p253, %s252, 11
        %s255 = smul.addr %s254, 8
        %s256 = scalar_lea.vmem %s0, %s255
        %p257 = pneg %p43
        %p258 = pneg %p40
        %p259 = pneg %p64
        %p260 = pneg %p61
        %p261 = pneg %p85
        %p262 = pneg %p82
        %p263 = pneg %p106
        %p264 = pneg %p103
        %p265 = pneg %p127
        %p266 = pneg %p124
        %p267 = pneg %p148
        %p268 = pneg %p145
        %p269 = pneg %p174
        %p270 = pneg %p171
        %s271 = sand.u32 %s161, 1
        %s272 = scalar_lea.sflag [#allocation5], %s271
        %s273 = sand.u32 %s161, 1
        %s274 = smul.addr %s273, 8
        %s275 = scalar_lea.vmem [#allocation8], %s274
        %s276 = smul.u32 6, %s22
        %p277 = scmp.lt.s32.totalorder %s276, 11
        %s278 = scalar_select %p277, %s276, 11
        %s279 = smul.addr %s278, 8
        %s280 = scalar_lea.vmem %s0, %s279
        %s281 = smul.u32 6, %s22
        %v283 = vld [vmem:[#allocation3] sm:$0xff]
        %v284 = vld [vmem:[#allocation3 + $0x8] sm:$0xff]
        %v285 = vpack.c.bf16 %v284, %v283
        %v286 = vld [vmem:[%s2] sm:$0xff]
        %v287 = vld [vmem:[%s2 + $0x8] sm:$0xff]
        %v288 = vld [vmem:[%s2 + $0x10] sm:$0xff]
        %v289 = vld [vmem:[%s2 + $0x18] sm:$0xff]
        %v290 = vld [vmem:[%s2 + $0x20] sm:$0xff]
        %v291 = vld [vmem:[%s2 + $0x28] sm:$0xff]
        %v292 = vld [vmem:[%s2 + $0x30] sm:$0xff]
        %v293 = vld [vmem:[%s2 + $0x38] sm:$0xff]
        %v294 = vld [vmem:[%s2 + $0x40] sm:$0xff]
        %v295 = vld [vmem:[%s2 + $0x48] sm:$0xff]
        %v296 = vld [vmem:[%s2 + $0x50] sm:$0xff]
        %v297 = vld [vmem:[%s2 + $0x58] sm:$0xff]
        %v298 = vpack.c.bf16 %v289, %v286
        %v299 = vpack.c.bf16 %v290, %v287
        %v300 = vpack.c.bf16 %v291, %v288
        %v301 = vpack.c.bf16 %v295, %v292
        %v302 = vpack.c.bf16 %v296, %v293
        %v303 = vpack.c.bf16 %v297, %v294
        %vm304 = vcmask 261120
        %v306 = vsel %vm304, %v285, 0
        %308 = vmatprep.subr.bf16.mxu0 %v299
        %309 = vmatpush1.bf16.msra.mxu0 %v298
        %310 = vmatprep.subr.bf16.mxu0 %v302
        %311 = vmatpush1.bf16.msra.mxu0 %v301
        %312 = vmatprep.subr.bf16.mxu0 0
        %313 = vmatpush1.bf16.msra.mxu0 0
        %314 = vmatprep.subr.bf16.mxu0 0
        %315 = vmatpush1.bf16.msra.mxu0 0
        %316 = vmatprep.subr.bf16.mxu0 0
        %317 = vmatpush1.bf16.msra.mxu0 0
        %318 = vmatprep.subr.bf16.mxu0 0
        %319 = vmatpush1.bf16.msra.mxu0 0
        %320 = vmatprep.subr.bf16.mxu0 0
        %321 = vmatpush1.bf16.msra.mxu0 0
        %322 = vmatprep.subr.bf16.mxu0 0
        %323 = vmatpush1.bf16.msra.mxu0 0
        %324 = vmatprep.subr.bf16.mxu0 0
        %325 = vmatpush1.bf16.msra.mxu0 0
        %326 = vmatprep.subr.bf16.mxu0 0
        %327 = vmatpush1.bf16.msra.mxu0 0
        %328 = vmatprep.subr.bf16.mxu0 0
        %329 = vmatpush1.bf16.msra.mxu0 0
        %330 = vmatprep.subr.bf16.mxu0 0
        %331 = vmatpush1.bf16.msra.mxu0 0
        %332 = vmatprep.subr.bf16.mxu0 0
        %333 = vmatpush1.bf16.msra.mxu0 0
        %334 = vmatprep.subr.bf16.mxu0 0
        %335 = vmatpush1.bf16.msra.mxu0 0
        %336 = vmatprep.subr.bf16.mxu0 0
        %337 = vmatpush1.bf16.msra.mxu0 0
        %338 = vmatprep.subr.bf16.mxu0 0
        %339 = vmatpush1.bf16.msra.mxu0 0
        %340 = vmatprep.mubr.bf16.mxu0 0
        %341 = vmatmul.mubr.bf16.gmra.mrb[0].mxu0 %v306
        %v342 = vpop.f32.mrb[0].mxu0
        %v343 = vadd.f32 0.0, %v342
        %v344 = vpop.f32.mrb[0].mxu0
        %v345 = vadd.f32 0.0, %v344
        %v346 = vpop.f32.mrb[0].mxu0
        %v347 = vadd.f32 0.0, %v346
        %v348 = vpop.f32.mrb[0].mxu0
        %v349 = vadd.f32 0.0, %v348
        %350 = vdwg.mxu0
        %351 = vmatprep.subr.bf16.mxu0 0
        %352 = vmatpush1.bf16.msra.mxu0 %v300
        %353 = vmatprep.subr.bf16.mxu0 0
        %354 = vmatpush1.bf16.msra.mxu0 %v303
        %355 = vmatprep.subr.bf16.mxu0 0
        %356 = vmatpush1.bf16.msra.mxu0 0
        %357 = vmatprep.subr.bf16.mxu0 0
        %358 = vmatpush1.bf16.msra.mxu0 0
        %359 = vmatprep.subr.bf16.mxu0 0
        %360 = vmatpush1.bf16.msra.mxu0 0
        %361 = vmatprep.subr.bf16.mxu0 0
        %362 = vmatpush1.bf16.msra.mxu0 0
        %363 = vmatprep.subr.bf16.mxu0 0
        %364 = vmatpush1.bf16.msra.mxu0 0
        %365 = vmatprep.subr.bf16.mxu0 0
        %366 = vmatpush1.bf16.msra.mxu0 0
        %367 = vmatprep.subr.bf16.mxu0 0
        %368 = vmatpush1.bf16.msra.mxu0 0
        %369 = vmatprep.subr.bf16.mxu0 0
        %370 = vmatpush1.bf16.msra.mxu0 0
        %371 = vmatprep.subr.bf16.mxu0 0
        %372 = vmatpush1.bf16.msra.mxu0 0
        %373 = vmatprep.subr.bf16.mxu0 0
        %374 = vmatpush1.bf16.msra.mxu0 0
        %375 = vmatprep.subr.bf16.mxu0 0
        %376 = vmatpush1.bf16.msra.mxu0 0
        %377 = vmatprep.subr.bf16.mxu0 0
        %378 = vmatpush1.bf16.msra.mxu0 0
        %379 = vmatprep.subr.bf16.mxu0 0
        %380 = vmatpush1.bf16.msra.mxu0 0
        %381 = vmatprep.subr.bf16.mxu0 0
        %382 = vmatpush1.bf16.msra.mxu0 0
        %383 = vmatprep.mubr.bf16.mxu0 0
        %384 = vmatmul.mubr.bf16.gmra.mrb[0].mxu0 %v306
        %v385 = vpop.f32.mrb[0].mxu0
        %v386 = vadd.f32 0.0, %v385
        %v387 = vpop.f32.mrb[0].mxu0
        %v388 = vpop.f32.mrb[0].mxu0
        %v389 = vadd.f32 0.0, %v388
        %v390 = vpop.f32.mrb[0].mxu0
        %391 = vdwg.mxu0
        %v392 = vld [vmem:[%s280] sm:$0xff]
        %v393 = vld [vmem:[%s280 + $0x8] sm:$0xff]
        %v394 = vld [vmem:[%s280 + $0x10] sm:$0xff]
        %v395 = vld [vmem:[%s280 + $0x18] sm:$0xff]
        %v396 = vld [vmem:[%s280 + $0x20] sm:$0xff]
        %v397 = vld [vmem:[%s280 + $0x28] sm:$0xff]
        %v398 = vlaneseq
        %v399 = vand.u32 %v398, 127
        %400 = vset.pattern.permute.xlu0 0
        %401 = vperm.xlu0 %400, %v392
        %v402 = vpop.permute.xlu0 %401
        %403 = vset.pattern.permute.xlu0 0
        %404 = vperm.xlu0 %403, %v393
        %v405 = vpop.permute.xlu0 %404
        %406 = vset.pattern.permute.xlu0 0
        %407 = vperm.xlu0 %406, %v394
        %v408 = vpop.permute.xlu0 %407
        %409 = vset.pattern.permute.xlu0 0
        %410 = vperm.xlu0 %409, %v395
        %v411 = vpop.permute.xlu0 %410
        %412 = vset.pattern.permute.xlu0 0
        %413 = vperm.xlu0 %412, %v396
        %v414 = vpop.permute.xlu0 %413
        %415 = vset.pattern.permute.xlu0 0
        %416 = vperm.xlu0 %415, %v397
        %v417 = vpop.permute.xlu0 %416
        %vm418 = vcmp.eq.s32.totalorder %v402, %v399
        %vm419 = vcmp.eq.s32.totalorder %v405, %v399
        %vm420 = vcmp.eq.s32.totalorder %v408, %v399
        %vm421 = vcmp.eq.s32.totalorder %v411, %v399
        %vm422 = vcmp.eq.s32.totalorder %v414, %v399
        %vm423 = vcmp.eq.s32.totalorder %v417, %v399
        %v424 = vsel %vm418, 1.0, 0.0
        %v425 = vsel %vm419, 1.0, 0.0
        %v426 = vsel %vm420, 1.0, 0.0
        %v427 = vsel %vm421, 1.0, 0.0
        %v428 = vsel %vm422, 1.0, 0.0
        %v429 = vsel %vm423, 1.0, 0.0
        %v430 = vpack.c.bf16 %v425, %v424
        %v431 = vpack.c.bf16 %v427, %v426
        %v432 = vpack.c.bf16 %v429, %v428
        %v433 = vpack.c.bf16 %v347, %v343
        %v434 = vpack.c.bf16 %v349, %v345
        %v435 = vpack.c.bf16 %v389, %v386
        %v436 = vld [vmem:[%s4] sm:$0x7]
        %v438 = vlaneseq
        %v439 = vshrl.u32 %v438, 7
        %v440 = vsub.s32 0, %v439
        %v441 = vrot.slane %v436, %v440
        %v442 = vlaneseq
        %v443 = vshrl.u32 %v442, 7
        %v444 = vsub.s32 1, %v443
        %v445 = vrot.slane %v436, %v444
        %v446 = vlaneseq
        %v447 = vshrl.u32 %v446, 7
        %v448 = vsub.s32 2, %v447
        %v449 = vrot.slane %v436, %v448
        %vm453 = vcmask 130048
        %v455 = vsel %vm453, %v430, 0
        %v458 = vsel %vm453, %v431, 0
        %v461 = vsel %vm453, %v432, 0
        %463 = vmatprep.subr.bf16.mxu0 %v434
        %464 = vmatpush1.bf16.msra.mxu0 %v433
        %465 = vmatprep.subr.bf16.mxu0 0
        %466 = vmatpush1.bf16.msra.mxu0 0
        %467 = vmatprep.subr.bf16.mxu0 0
        %468 = vmatpush1.bf16.msra.mxu0 0
        %469 = vmatprep.subr.bf16.mxu0 0
        %470 = vmatpush1.bf16.msra.mxu0 0
        %471 = vmatprep.subr.bf16.mxu0 0
        %472 = vmatpush1.bf16.msra.mxu0 0
        %473 = vmatprep.subr.bf16.mxu0 0
        %474 = vmatpush1.bf16.msra.mxu0 0
        %475 = vmatprep.subr.bf16.mxu0 0
        %476 = vmatpush1.bf16.msra.mxu0 0
        %477 = vmatprep.subr.bf16.mxu0 0
        %478 = vmatpush1.bf16.msra.mxu0 0
        %479 = vmatprep.subr.bf16.mxu0 0
        %480 = vmatpush1.bf16.msra.mxu0 0
        %481 = vmatprep.subr.bf16.mxu0 0
        %482 = vmatpush1.bf16.msra.mxu0 0
        %483 = vmatprep.subr.bf16.mxu0 0
        %484 = vmatpush1.bf16.msra.mxu0 0
        %485 = vmatprep.subr.bf16.mxu0 0
        %486 = vmatpush1.bf16.msra.mxu0 0
        %487 = vmatprep.subr.bf16.mxu0 0
        %488 = vmatpush1.bf16.msra.mxu0 0
        %489 = vmatprep.subr.bf16.mxu0 0
        %490 = vmatpush1.bf16.msra.mxu0 0
        %491 = vmatprep.subr.bf16.mxu0 0
        %492 = vmatpush1.bf16.msra.mxu0 0
        %493 = vmatprep.subr.bf16.mxu0 0
        %494 = vmatpush1.bf16.msra.mxu0 0
        %495 = vmatprep.mubr.bf16.mxu0 0
        %496 = vmatmul.mubr.bf16.gmra.mrb[0].mxu0 %v455
        %v497 = vpop.f32.mrb[0].mxu0
        %v498 = vadd.f32 %v441, %v497
        %v499 = vpop.f32.mrb[0].mxu0
        %v500 = vadd.f32 %v445, %v499
        %v501 = vpop.f32.mrb[0].mxu0
        %v502 = vadd.f32 %v441, %v501
        %v503 = vpop.f32.mrb[0].mxu0
        %v504 = vadd.f32 %v445, %v503
        %505 = vmatprep.mubr.bf16.mxu0 0
        %506 = vmatmul.mubr.bf16.gmra.mrb[0].mxu0 %v458
        %v507 = vpop.f32.mrb[0].mxu0
        %v508 = vadd.f32 %v441, %v507
        %v509 = vpop.f32.mrb[0].mxu0
        %v510 = vadd.f32 %v445, %v509
        %v511 = vpop.f32.mrb[0].mxu0
        %v512 = vadd.f32 %v441, %v511
        %v513 = vpop.f32.mrb[0].mxu0
        %v514 = vadd.f32 %v445, %v513
        %515 = vmatprep.mubr.bf16.mxu0 0
        %516 = vmatmul.mubr.bf16.gmra.mrb[0].mxu0 %v461
        %v517 = vpop.f32.mrb[0].mxu0
        %v518 = vadd.f32 %v441, %v517
        %v519 = vpop.f32.mrb[0].mxu0
        %v520 = vadd.f32 %v445, %v519
        %v521 = vpop.f32.mrb[0].mxu0
        %v522 = vadd.f32 %v441, %v521
        %v523 = vpop.f32.mrb[0].mxu0
        %v524 = vadd.f32 %v445, %v523
        %525 = vdwg.mxu0
        %526 = vmatprep.subr.bf16.mxu0 0
        %527 = vmatpush1.bf16.msra.mxu0 %v435
        %528 = vmatprep.subr.bf16.mxu0 0
        %529 = vmatpush1.bf16.msra.mxu0 0
        %530 = vmatprep.subr.bf16.mxu0 0
        %531 = vmatpush1.bf16.msra.mxu0 0
        %532 = vmatprep.subr.bf16.mxu0 0
        %533 = vmatpush1.bf16.msra.mxu0 0
        %534 = vmatprep.subr.bf16.mxu0 0
        %535 = vmatpush1.bf16.msra.mxu0 0
        %536 = vmatprep.subr.bf16.mxu0 0
        %537 = vmatpush1.bf16.msra.mxu0 0
        %538 = vmatprep.subr.bf16.mxu0 0
        %539 = vmatpush1.bf16.msra.mxu0 0
        %540 = vmatprep.subr.bf16.mxu0 0
        %541 = vmatpush1.bf16.msra.mxu0 0
        %542 = vmatprep.subr.bf16.mxu0 0
        %543 = vmatpush1.bf16.msra.mxu0 0
        %544 = vmatprep.subr.bf16.mxu0 0
        %545 = vmatpush1.bf16.msra.mxu0 0
        %546 = vmatprep.subr.bf16.mxu0 0
        %547 = vmatpush1.bf16.msra.mxu0 0
        %548 = vmatprep.subr.bf16.mxu0 0
        %549 = vmatpush1.bf16.msra.mxu0 0
        %550 = vmatprep.subr.bf16.mxu0 0
        %551 = vmatpush1.bf16.msra.mxu0 0
        %552 = vmatprep.subr.bf16.mxu0 0
        %553 = vmatpush1.bf16.msra.mxu0 0
        %554 = vmatprep.subr.bf16.mxu0 0
        %555 = vmatpush1.bf16.msra.mxu0 0
        %556 = vmatprep.subr.bf16.mxu0 0
        %557 = vmatpush1.bf16.msra.mxu0 0
        %558 = vmatprep.mubr.bf16.mxu0 0
        %559 = vmatmul.mubr.bf16.gmra.mrb[0].mxu0 %v455
        %v560 = vpop.f32.mrb[0].mxu0
        %v561 = vadd.f32 %v449, %v560
        %v562 = vpop.f32.mrb[0].mxu0
        %v563 = vpop.f32.mrb[0].mxu0
        %v564 = vadd.f32 %v449, %v563
        %v565 = vpop.f32.mrb[0].mxu0
        %566 = vmatprep.mubr.bf16.mxu0 0
        %567 = vmatmul.mubr.bf16.gmra.mrb[0].mxu0 %v458
        %v568 = vpop.f32.mrb[0].mxu0
        %v569 = vadd.f32 %v449, %v568
        %v570 = vpop.f32.mrb[0].mxu0
        %v571 = vpop.f32.mrb[0].mxu0
        %v572 = vadd.f32 %v449, %v571
        %v573 = vpop.f32.mrb[0].mxu0
        %574 = vmatprep.mubr.bf16.mxu0 0
        %575 = vmatmul.mubr.bf16.gmra.mrb[0].mxu0 %v461
        %v576 = vpop.f32.mrb[0].mxu0
        %v577 = vadd.f32 %v449, %v576
        %v578 = vpop.f32.mrb[0].mxu0
        %v579 = vpop.f32.mrb[0].mxu0
        %v580 = vadd.f32 %v449, %v579
        %v581 = vpop.f32.mrb[0].mxu0
        %582 = vdwg.mxu0
        %583 = vst [vmem:[#allocation2] sm:$0xff] %v498
        %584 = vst [vmem:[#allocation2 + $0x8] sm:$0xff] %v500
        %585 = vst [vmem:[#allocation2 + $0x10] sm:$0xff] %v561
        %586 = vst [vmem:[#allocation2 + $0x18] sm:$0xff] %v502
        %587 = vst [vmem:[#allocation2 + $0x20] sm:$0xff] %v504
        %588 = vst [vmem:[#allocation2 + $0x28] sm:$0xff] %v564
        %589 = vst [vmem:[#allocation2 + $0x30] sm:$0xff] %v508
        %590 = vst [vmem:[#allocation2 + $0x38] sm:$0xff] %v510
        %591 = vst [vmem:[#allocation2 + $0x40] sm:$0xff] %v569
        %592 = vst [vmem:[#allocation2 + $0x48] sm:$0xff] %v512
        %593 = vst [vmem:[#allocation2 + $0x50] sm:$0xff] %v514
        %594 = vst [vmem:[#allocation2 + $0x58] sm:$0xff] %v572
        %595 = vst [vmem:[#allocation2 + $0x60] sm:$0xff] %v518
        %596 = vst [vmem:[#allocation2 + $0x68] sm:$0xff] %v520
        %597 = vst [vmem:[#allocation2 + $0x70] sm:$0xff] %v577
        %598 = vst [vmem:[#allocation2 + $0x78] sm:$0xff] %v522
        %599 = vst [vmem:[#allocation2 + $0x80] sm:$0xff] %v524
        %600 = vst [vmem:[#allocation2 + $0x88] sm:$0xff] %v580
        %v601 = vld [vmem:[#allocation6] sm:$0xff]
        %v602 = vld [vmem:[#allocation6 + $0x8] sm:$0xff]
        %v603 = vld [vmem:[#allocation6 + $0x10] sm:$0xff]
        %v604 = vld [vmem:[#allocation6 + $0x18] sm:$0xff]
        %v605 = vld [vmem:[#allocation6 + $0x20] sm:$0xff]
        %v606 = vld [vmem:[#allocation6 + $0x28] sm:$0xff]
        %v607 = vld [vmem:[#allocation6 + $0x30] sm:$0xff]
        %v608 = vld [vmem:[#allocation6 + $0x38] sm:$0xff]
        %v609 = vld [vmem:[#allocation6 + $0x40] sm:$0xff]
        %v610 = vld [vmem:[#allocation6 + $0x48] sm:$0xff]
        %v611 = vld [vmem:[#allocation6 + $0x50] sm:$0xff]
        %v612 = vld [vmem:[#allocation6 + $0x58] sm:$0xff]
        %v613 = vld [vmem:[#allocation6 + $0x60] sm:$0xff]
        %v614 = vld [vmem:[#allocation6 + $0x68] sm:$0xff]
        %v615 = vld [vmem:[#allocation6 + $0x70] sm:$0xff]
        %v616 = vld [vmem:[#allocation6 + $0x78] sm:$0xff]
        %v617 = vld [vmem:[#allocation6 + $0x80] sm:$0xff]
        %v618 = vld [vmem:[#allocation6 + $0x88] sm:$0xff]
        %v619 = vld [vmem:[#allocation6 + $0x90] sm:$0xff]
        %v620 = vld [vmem:[#allocation6 + $0x98] sm:$0xff]
        %v621 = vld [vmem:[#allocation6 + $0xa0] sm:$0xff]
        %v622 = vld [vmem:[#allocation6 + $0xa8] sm:$0xff]
        %v623 = vld [vmem:[#allocation6 + $0xb0] sm:$0xff]
        %v624 = vld [vmem:[#allocation6 + $0xb8] sm:$0xff]
        %v625 = vld [vmem:[#allocation6 + $0xc0] sm:$0xff]
        %v626 = vld [vmem:[#allocation6 + $0xc8] sm:$0xff]
        %v627 = vld [vmem:[#allocation6 + $0xd0] sm:$0xff]
        %v628 = vld [vmem:[#allocation6 + $0xd8] sm:$0xff]
        %v629 = vld [vmem:[#allocation6 + $0xe0] sm:$0xff]
        %v630 = vld [vmem:[#allocation6 + $0xe8] sm:$0xff]
        %v631 = vld [vmem:[#allocation6 + $0xf0] sm:$0xff]
        %v632 = vld [vmem:[#allocation6 + $0xf8] sm:$0xff]
        %v633 = vld [vmem:[#allocation6 + $0x100] sm:$0xff]
        %v634 = vld [vmem:[#allocation6 + $0x108] sm:$0xff]
        %v635 = vld [vmem:[#allocation6 + $0x110] sm:$0xff]
        %v636 = vld [vmem:[#allocation6 + $0x118] sm:$0xff]
        %v637 = vld [vmem:[#allocation6 + $0x120] sm:$0xff]
        %v638 = vld [vmem:[#allocation6 + $0x128] sm:$0xff]
        %v639 = vld [vmem:[#allocation6 + $0x130] sm:$0xff]
        %v640 = vld [vmem:[#allocation6 + $0x138] sm:$0xff]
        %v641 = vld [vmem:[#allocation6 + $0x140] sm:$0xff]
        %v642 = vld [vmem:[#allocation6 + $0x148] sm:$0xff]
        %v643 = vld [vmem:[#allocation6 + $0x150] sm:$0xff]
        %v644 = vld [vmem:[#allocation6 + $0x158] sm:$0xff]
        %v645 = vld [vmem:[#allocation6 + $0x160] sm:$0xff]
        %v646 = vld [vmem:[#allocation6 + $0x168] sm:$0xff]
        %v647 = vld [vmem:[#allocation6 + $0x170] sm:$0xff]
        %v648 = vld [vmem:[#allocation6 + $0x178] sm:$0xff]
        %v649 = vpack.c.bf16 %v604, %v601
        %v650 = vpack.c.bf16 %v605, %v602
        %v651 = vpack.c.bf16 %v606, %v603
        %v652 = vpack.c.bf16 %v610, %v607
        %v653 = vpack.c.bf16 %v611, %v608
        %v654 = vpack.c.bf16 %v612, %v609
        %v655 = vpack.c.bf16 %v616, %v613
        %v656 = vpack.c.bf16 %v617, %v614
        %v657 = vpack.c.bf16 %v618, %v615
        %v658 = vpack.c.bf16 %v622, %v619
        %v659 = vpack.c.bf16 %v623, %v620
        %v660 = vpack.c.bf16 %v624, %v621
        %v661 = vpack.c.bf16 %v628, %v625
        %v662 = vpack.c.bf16 %v629, %v626
        %v663 = vpack.c.bf16 %v630, %v627
        %v664 = vpack.c.bf16 %v634, %v631
        %v665 = vpack.c.bf16 %v635, %v632
        %v666 = vpack.c.bf16 %v636, %v633
        %v667 = vpack.c.bf16 %v640, %v637
        %v668 = vpack.c.bf16 %v641, %v638
        %v669 = vpack.c.bf16 %v642, %v639
        %v670 = vpack.c.bf16 %v646, %v643
        %v671 = vpack.c.bf16 %v647, %v644
        %v672 = vpack.c.bf16 %v648, %v645
        %v673 = vld [vmem:[%s5] sm:$0x7]
        %v675 = vlaneseq
        %v676 = vshrl.u32 %v675, 7
        %v677 = vsub.s32 0, %v676
        %v678 = vrot.slane %v673, %v677
        %v679 = vlaneseq
        %v680 = vshrl.u32 %v679, 7
        %v681 = vsub.s32 1, %v680
        %v682 = vrot.slane %v673, %v681
        %v683 = vlaneseq
        %v684 = vshrl.u32 %v683, 7
        %v685 = vsub.s32 2, %v684
        %v686 = vrot.slane %v673, %v685
        %s690 = smul.u32 0, 3
        %s691 = smul.addr %s690, 8
        %s692 = scalar_lea.vmem [#allocation2], %s691
        %v693 = vld [vmem:[%s692] sm:$0xff]
        %v694 = vld [vmem:[%s692 + $0x8] sm:$0xff]
        %v695 = vld [vmem:[%s692 + $0x10] sm:$0xff]
        %696 = vmatprep.subr.bf16.mxu0 %v650
        %697 = vmatpush1.bf16.msra.mxu0 %v649
        %698 = vmatprep.subr.bf16.mxu0 %v653
        %699 = vmatpush1.bf16.msra.mxu0 %v652
        %700 = vmatprep.subr.bf16.mxu0 %v656
        %701 = vmatpush1.bf16.msra.mxu0 %v655
        %702 = vmatprep.subr.bf16.mxu0 %v659
        %703 = vmatpush1.bf16.msra.mxu0 %v658
        %704 = vmatprep.subr.bf16.mxu0 %v662
        %705 = vmatpush1.bf16.msra.mxu0 %v661
        %706 = vmatprep.subr.bf16.mxu0 %v665
        %707 = vmatpush1.bf16.msra.mxu0 %v664
        %708 = vmatprep.subr.bf16.mxu0 %v668
        %709 = vmatpush1.bf16.msra.mxu0 %v667
        %710 = vmatprep.subr.bf16.mxu0 %v671
        %711 = vmatpush1.bf16.msra.mxu0 %v670
        %712 = vmatprep.subr.bf16.mxu0 0
        %713 = vmatpush1.bf16.msra.mxu0 0
        %714 = vmatprep.subr.bf16.mxu0 0
        %715 = vmatpush1.bf16.msra.mxu0 0
        %716 = vmatprep.subr.bf16.mxu0 0
        %717 = vmatpush1.bf16.msra.mxu0 0
        %718 = vmatprep.subr.bf16.mxu0 0
        %719 = vmatpush1.bf16.msra.mxu0 0
        %720 = vmatprep.subr.bf16.mxu0 0
        %721 = vmatpush1.bf16.msra.mxu0 0
        %722 = vmatprep.subr.bf16.mxu0 0
        %723 = vmatpush1.bf16.msra.mxu0 0
        %724 = vmatprep.subr.bf16.mxu0 0
        %725 = vmatpush1.bf16.msra.mxu0 0
        %726 = vmatprep.subr.bf16.mxu0 0
        %727 = vmatpush1.bf16.msra.mxu0 0
        %728 = vmatprep.mubr.bf16.mxu0 0
        %729 = vmatmul.mubr.bf16.gmra.mrb[0].mxu0 0
        %v730 = vpop.f32.mrb[0].mxu0
        %v731 = vadd.f32 %v678, %v730
        %v732 = vpop.f32.mrb[0].mxu0
        %v733 = vadd.f32 %v682, %v732
        %v734 = vpop.f32.mrb[0].mxu0
        %v735 = vpop.f32.mrb[0].mxu0
        %736 = vdwg.mxu0
        %737 = vmatprep.subr.bf16.mxu0 0
        %738 = vmatpush1.bf16.msra.mxu0 %v651
        %739 = vmatprep.subr.bf16.mxu0 0
        %740 = vmatpush1.bf16.msra.mxu0 %v654
        %741 = vmatprep.subr.bf16.mxu0 0
        %742 = vmatpush1.bf16.msra.mxu0 %v657
        %743 = vmatprep.subr.bf16.mxu0 0
        %744 = vmatpush1.bf16.msra.mxu0 %v660
        %745 = vmatprep.subr.bf16.mxu0 0
        %746 = vmatpush1.bf16.msra.mxu0 %v663
        %747 = vmatprep.subr.bf16.mxu0 0
        %748 = vmatpush1.bf16.msra.mxu0 %v666
        %749 = vmatprep.subr.bf16.mxu0 0
        %750 = vmatpush1.bf16.msra.mxu0 %v669
        %751 = vmatprep.subr.bf16.mxu0 0
        %752 = vmatpush1.bf16.msra.mxu0 %v672
        %753 = vmatprep.subr.bf16.mxu0 0
        %754 = vmatpush1.bf16.msra.mxu0 0
        %755 = vmatprep.subr.bf16.mxu0 0
        %756 = vmatpush1.bf16.msra.mxu0 0
        %757 = vmatprep.subr.bf16.mxu0 0
        %758 = vmatpush1.bf16.msra.mxu0 0
        %759 = vmatprep.subr.bf16.mxu0 0
        %760 = vmatpush1.bf16.msra.mxu0 0
        %761 = vmatprep.subr.bf16.mxu0 0
        %762 = vmatpush1.bf16.msra.mxu0 0
        %763 = vmatprep.subr.bf16.mxu0 0
        %764 = vmatpush1.bf16.msra.mxu0 0
        %765 = vmatprep.subr.bf16.mxu0 0
        %766 = vmatpush1.bf16.msra.mxu0 0
        %767 = vmatprep.subr.bf16.mxu0 0
        %768 = vmatpush1.bf16.msra.mxu0 0
        %769 = vmatprep.mubr.bf16.mxu0 0
        %770 = vmatmul.mubr.bf16.gmra.mrb[0].mxu0 0
        %v771 = vpop.f32.mrb[0].mxu0
        %v772 = vadd.f32 %v686, %v771
        %v773 = vpop.f32.mrb[0].mxu0
        %v774 = vpop.f32.mrb[0].mxu0
        %v775 = vpop.f32.mrb[0].mxu0
        %776 = vdwg.mxu0
        %v777 = vadd.f32 %v693, %v731
        %v778 = vxor.u32 %v777, 2147483648
        %v779 = vmul.f32 %v778, 1.442695
        %v780 = vpow.pop %v779
        %v781 = vadd.f32 %v780, 1.0
        %v782 = vrcp.pop %v781
        %v783 = vmul.f32 1.0, %v782
        %v784 = vadd.f32 %v694, %v733
        %v785 = vxor.u32 %v784, 2147483648
        %v786 = vmul.f32 %v785, 1.442695
        %v787 = vpow.pop %v786
        %v788 = vadd.f32 %v787, 1.0
        %v789 = vrcp.pop %v788
        %v790 = vmul.f32 1.0, %v789
        %v791 = vmul.f32 %v783, %v772
        %v792 = vadd.f32 %v695, %v791
        %v793 = vtanh.pop %v792
        %v794 = vsub.f32 1.0, %v790
        %v795 = vmul.f32 %v794, %v793
        %v796 = vmul.f32 %v790, 0.0
        %v797 = vadd.f32 %v795, %v796
        %s798 = smul.u32 1, 3
        %s799 = smul.addr %s798, 8
        %s800 = scalar_lea.vmem [#allocation2], %s799
        %v801 = vld [vmem:[%s800] sm:$0xff]
        %v802 = vld [vmem:[%s800 + $0x8] sm:$0xff]
        %v803 = vld [vmem:[%s800 + $0x10] sm:$0xff]
        %v804 = vpack.c.bf16 %v797, %v797
        %805 = vmatprep.subr.bf16.mxu0 %v650
        %806 = vmatpush1.bf16.msra.mxu0 %v649
        %807 = vmatprep.subr.bf16.mxu0 %v653
        %808 = vmatpush1.bf16.msra.mxu0 %v652
        %809 = vmatprep.subr.bf16.mxu0 %v656
        %810 = vmatpush1.bf16.msra.mxu0 %v655
        %811 = vmatprep.subr.bf16.mxu0 %v659
        %812 = vmatpush1.bf16.msra.mxu0 %v658
        %813 = vmatprep.subr.bf16.mxu0 %v662
        %814 = vmatpush1.bf16.msra.mxu0 %v661
        %815 = vmatprep.subr.bf16.mxu0 %v665
        %816 = vmatpush1.bf16.msra.mxu0 %v664
        %817 = vmatprep.subr.bf16.mxu0 %v668
        %818 = vmatpush1.bf16.msra.mxu0 %v667
        %819 = vmatprep.subr.bf16.mxu0 %v671
        %820 = vmatpush1.bf16.msra.mxu0 %v670
        %821 = vmatprep.subr.bf16.mxu0 0
        %822 = vmatpush1.bf16.msra.mxu0 0
        %823 = vmatprep.subr.bf16.mxu0 0
        %824 = vmatpush1.bf16.msra.mxu0 0
        %825 = vmatprep.subr.bf16.mxu0 0
        %826 = vmatpush1.bf16.msra.mxu0 0
        %827 = vmatprep.subr.bf16.mxu0 0
        %828 = vmatpush1.bf16.msra.mxu0 0
        %829 = vmatprep.subr.bf16.mxu0 0
        %830 = vmatpush1.bf16.msra.mxu0 0
        %831 = vmatprep.subr.bf16.mxu0 0
        %832 = vmatpush1.bf16.msra.mxu0 0
        %833 = vmatprep.subr.bf16.mxu0 0
        %834 = vmatpush1.bf16.msra.mxu0 0
        %835 = vmatprep.subr.bf16.mxu0 0
        %836 = vmatpush1.bf16.msra.mxu0 0
        %837 = vmatprep.mubr.bf16.mxu0 0
        %838 = vmatmul.mubr.bf16.gmra.mrb[0].mxu0 %v804
        %v839 = vpop.f32.mrb[0].mxu0
        %v840 = vadd.f32 %v678, %v839
        %v841 = vpop.f32.mrb[0].mxu0
        %v842 = vadd.f32 %v682, %v841
        %v843 = vpop.f32.mrb[0].mxu0
        %v844 = vpop.f32.mrb[0].mxu0
        %845 = vdwg.mxu0
        %846 = vmatprep.subr.bf16.mxu0 0
        %847 = vmatpush1.bf16.msra.mxu0 %v651
        %848 = vmatprep.subr.bf16.mxu0 0
        %849 = vmatpush1.bf16.msra.mxu0 %v654
        %850 = vmatprep.subr.bf16.mxu0 0
        %851 = vmatpush1.bf16.msra.mxu0 %v657
        %852 = vmatprep.subr.bf16.mxu0 0
        %853 = vmatpush1.bf16.msra.mxu0 %v660
        %854 = vmatprep.subr.bf16.mxu0 0
        %855 = vmatpush1.bf16.msra.mxu0 %v663
        %856 = vmatprep.subr.bf16.mxu0 0
        %857 = vmatpush1.bf16.msra.mxu0 %v666
        %858 = vmatprep.subr.bf16.mxu0 0
        %859 = vmatpush1.bf16.msra.mxu0 %v669
        %860 = vmatprep.subr.bf16.mxu0 0
        %861 = vmatpush1.bf16.msra.mxu0 %v672
        %862 = vmatprep.subr.bf16.mxu0 0
        %863 = vmatpush1.bf16.msra.mxu0 0
        %864 = vmatprep.subr.bf16.mxu0 0
        %865 = vmatpush1.bf16.msra.mxu0 0
        %866 = vmatprep.subr.bf16.mxu0 0
        %867 = vmatpush1.bf16.msra.mxu0 0
        %868 = vmatprep.subr.bf16.mxu0 0
        %869 = vmatpush1.bf16.msra.mxu0 0
        %870 = vmatprep.subr.bf16.mxu0 0
        %871 = vmatpush1.bf16.msra.mxu0 0
        %872 = vmatprep.subr.bf16.mxu0 0
        %873 = vmatpush1.bf16.msra.mxu0 0
        %874 = vmatprep.subr.bf16.mxu0 0
        %875 = vmatpush1.bf16.msra.mxu0 0
        %876 = vmatprep.subr.bf16.mxu0 0
        %877 = vmatpush1.bf16.msra.mxu0 0
        %878 = vmatprep.mubr.bf16.mxu0 0
        %879 = vmatmul.mubr.bf16.gmra.mrb[0].mxu0 %v804
        %v880 = vpop.f32.mrb[0].mxu0
        %v881 = vadd.f32 %v686, %v880
        %v882 = vpop.f32.mrb[0].mxu0
        %v883 = vpop.f32.mrb[0].mxu0
        %v884 = vpop.f32.mrb[0].mxu0
        %885 = vdwg.mxu0
        %v886 = vadd.f32 %v801, %v840
        %v887 = vxor.u32 %v886, 2147483648
        %v888 = vmul.f32 %v887, 1.442695
        %v889 = vpow.pop %v888
        %v890 = vadd.f32 %v889, 1.0
        %v891 = vrcp.pop %v890
        %v892 = vmul.f32 1.0, %v891
        %v893 = vadd.f32 %v802, %v842
        %v894 = vxor.u32 %v893, 2147483648
        %v895 = vmul.f32 %v894, 1.442695
        %v896 = vpow.pop %v895
        %v897 = vadd.f32 %v896, 1.0
        %v898 = vrcp.pop %v897
        %v899 = vmul.f32 1.0, %v898
        %v900 = vmul.f32 %v892, %v881
        %v901 = vadd.f32 %v803, %v900
        %v902 = vtanh.pop %v901
        %v903 = vsub.f32 1.0, %v899
        %v904 = vmul.f32 %v903, %v902
        %v905 = vmul.f32 %v899, %v797
        %v906 = vadd.f32 %v904, %v905
        %s907 = smul.u32 2, 3
        %s908 = smul.addr %s907, 8
        %s909 = scalar_lea.vmem [#allocation2], %s908
        %v910 = vld [vmem:[%s909] sm:$0xff]
        %v911 = vld [vmem:[%s909 + $0x8] sm:$0xff]
        %v912 = vld [vmem:[%s909 + $0x10] sm:$0xff]
        %v913 = vpack.c.bf16 %v906, %v906
        %914 = vmatprep.subr.bf16.mxu0 %v650
        %915 = vmatpush1.bf16.msra.mxu0 %v649
        %916 = vmatprep.subr.bf16.mxu0 %v653
        %917 = vmatpush1.bf16.msra.mxu0 %v652
        %918 = vmatprep.subr.bf16.mxu0 %v656
        %919 = vmatpush1.bf16.msra.mxu0 %v655
        %920 = vmatprep.subr.bf16.mxu0 %v659
        %921 = vmatpush1.bf16.msra.mxu0 %v658
        %922 = vmatprep.subr.bf16.mxu0 %v662
        %923 = vmatpush1.bf16.msra.mxu0 %v661
        %924 = vmatprep.subr.bf16.mxu0 %v665
        %925 = vmatpush1.bf16.msra.mxu0 %v664
        %926 = vmatprep.subr.bf16.mxu0 %v668
        %927 = vmatpush1.bf16.msra.mxu0 %v667
        %928 = vmatprep.subr.bf16.mxu0 %v671
        %929 = vmatpush1.bf16.msra.mxu0 %v670
        %930 = vmatprep.subr.bf16.mxu0 0
        %931 = vmatpush1.bf16.msra.mxu0 0
        %932 = vmatprep.subr.bf16.mxu0 0
        %933 = vmatpush1.bf16.msra.mxu0 0
        %934 = vmatprep.subr.bf16.mxu0 0
        %935 = vmatpush1.bf16.msra.mxu0 0
        %936 = vmatprep.subr.bf16.mxu0 0
        %937 = vmatpush1.bf16.msra.mxu0 0
        %938 = vmatprep.subr.bf16.mxu0 0
        %939 = vmatpush1.bf16.msra.mxu0 0
        %940 = vmatprep.subr.bf16.mxu0 0
        %941 = vmatpush1.bf16.msra.mxu0 0
        %942 = vmatprep.subr.bf16.mxu0 0
        %943 = vmatpush1.bf16.msra.mxu0 0
        %944 = vmatprep.subr.bf16.mxu0 0
        %945 = vmatpush1.bf16.msra.mxu0 0
        %946 = vmatprep.mubr.bf16.mxu0 0
        %947 = vmatmul.mubr.bf16.gmra.mrb[0].mxu0 %v913
        %v948 = vpop.f32.mrb[0].mxu0
        %v949 = vadd.f32 %v678, %v948
        %v950 = vpop.f32.mrb[0].mxu0
        %v951 = vadd.f32 %v682, %v950
        %v952 = vpop.f32.mrb[0].mxu0
        %v953 = vpop.f32.mrb[0].mxu0
        %954 = vdwg.mxu0
        %955 = vmatprep.subr.bf16.mxu0 0
        %956 = vmatpush1.bf16.msra.mxu0 %v651
        %957 = vmatprep.subr.bf16.mxu0 0
        %958 = vmatpush1.bf16.msra.mxu0 %v654
        %959 = vmatprep.subr.bf16.mxu0 0
        %960 = vmatpush1.bf16.msra.mxu0 %v657
        %961 = vmatprep.subr.bf16.mxu0 0
        %962 = vmatpush1.bf16.msra.mxu0 %v660
        %963 = vmatprep.subr.bf16.mxu0 0
        %964 = vmatpush1.bf16.msra.mxu0 %v663
        %965 = vmatprep.subr.bf16.mxu0 0
        %966 = vmatpush1.bf16.msra.mxu0 %v666
        %967 = vmatprep.subr.bf16.mxu0 0
        %968 = vmatpush1.bf16.msra.mxu0 %v669
        %969 = vmatprep.subr.bf16.mxu0 0
        %970 = vmatpush1.bf16.msra.mxu0 %v672
        %971 = vmatprep.subr.bf16.mxu0 0
        %972 = vmatpush1.bf16.msra.mxu0 0
        %973 = vmatprep.subr.bf16.mxu0 0
        %974 = vmatpush1.bf16.msra.mxu0 0
        %975 = vmatprep.subr.bf16.mxu0 0
        %976 = vmatpush1.bf16.msra.mxu0 0
        %977 = vmatprep.subr.bf16.mxu0 0
        %978 = vmatpush1.bf16.msra.mxu0 0
        %979 = vmatprep.subr.bf16.mxu0 0
        %980 = vmatpush1.bf16.msra.mxu0 0
        %981 = vmatprep.subr.bf16.mxu0 0
        %982 = vmatpush1.bf16.msra.mxu0 0
        %983 = vmatprep.subr.bf16.mxu0 0
        %984 = vmatpush1.bf16.msra.mxu0 0
        %985 = vmatprep.subr.bf16.mxu0 0
        %986 = vmatpush1.bf16.msra.mxu0 0
        %987 = vmatprep.mubr.bf16.mxu0 0
        %988 = vmatmul.mubr.bf16.gmra.mrb[0].mxu0 %v913
        %v989 = vpop.f32.mrb[0].mxu0
        %v990 = vadd.f32 %v686, %v989
        %v991 = vpop.f32.mrb[0].mxu0
        %v992 = vpop.f32.mrb[0].mxu0
        %v993 = vpop.f32.mrb[0].mxu0
        %994 = vdwg.mxu0
        %v995 = vadd.f32 %v910, %v949
        %v996 = vxor.u32 %v995, 2147483648
        %v997 = vmul.f32 %v996, 1.442695
        %v998 = vpow.pop %v997
        %v999 = vadd.f32 %v998, 1.0
        %v1000 = vrcp.pop %v999
        %v1001 = vmul.f32 1.0, %v1000
        %v1002 = vadd.f32 %v911, %v951
        %v1003 = vxor.u32 %v1002, 2147483648
        %v1004 = vmul.f32 %v1003, 1.442695
        %v1005 = vpow.pop %v1004
        %v1006 = vadd.f32 %v1005, 1.0
        %v1007 = vrcp.pop %v1006
        %v1008 = vmul.f32 1.0, %v1007
        %v1009 = vmul.f32 %v1001, %v990
        %v1010 = vadd.f32 %v912, %v1009
        %v1011 = vtanh.pop %v1010
        %v1012 = vsub.f32 1.0, %v1008
        %v1013 = vmul.f32 %v1012, %v1011
        %v1014 = vmul.f32 %v1008, %v906
        %v1015 = vadd.f32 %v1013, %v1014
        %s1016 = smul.u32 3, 3
        %s1017 = smul.addr %s1016, 8
        %s1018 = scalar_lea.vmem [#allocation2], %s1017
        %v1019 = vld [vmem:[%s1018] sm:$0xff]
        %v1020 = vld [vmem:[%s1018 + $0x8] sm:$0xff]
        %v1021 = vld [vmem:[%s1018 + $0x10] sm:$0xff]
        %v1022 = vpack.c.bf16 %v1015, %v1015
        %1023 = vmatprep.subr.bf16.mxu0 %v650
        %1024 = vmatpush1.bf16.msra.mxu0 %v649
        %1025 = vmatprep.subr.bf16.mxu0 %v653
        %1026 = vmatpush1.bf16.msra.mxu0 %v652
        %1027 = vmatprep.subr.bf16.mxu0 %v656
        %1028 = vmatpush1.bf16.msra.mxu0 %v655
        %1029 = vmatprep.subr.bf16.mxu0 %v659
        %1030 = vmatpush1.bf16.msra.mxu0 %v658
        %1031 = vmatprep.subr.bf16.mxu0 %v662
        %1032 = vmatpush1.bf16.msra.mxu0 %v661
        %1033 = vmatprep.subr.bf16.mxu0 %v665
        %1034 = vmatpush1.bf16.msra.mxu0 %v664
        %1035 = vmatprep.subr.bf16.mxu0 %v668
        %1036 = vmatpush1.bf16.msra.mxu0 %v667
        %1037 = vmatprep.subr.bf16.mxu0 %v671
        %1038 = vmatpush1.bf16.msra.mxu0 %v670
        %1039 = vmatprep.subr.bf16.mxu0 0
        %1040 = vmatpush1.bf16.msra.mxu0 0
        %1041 = vmatprep.subr.bf16.mxu0 0
        %1042 = vmatpush1.bf16.msra.mxu0 0
        %1043 = vmatprep.subr.bf16.mxu0 0
        %1044 = vmatpush1.bf16.msra.mxu0 0
        %1045 = vmatprep.subr.bf16.mxu0 0
        %1046 = vmatpush1.bf16.msra.mxu0 0
        %1047 = vmatprep.subr.bf16.mxu0 0
        %1048 = vmatpush1.bf16.msra.mxu0 0
        %1049 = vmatprep.subr.bf16.mxu0 0
        %1050 = vmatpush1.bf16.msra.mxu0 0
        %1051 = vmatprep.subr.bf16.mxu0 0
        %1052 = vmatpush1.bf16.msra.mxu0 0
        %1053 = vmatprep.subr.bf16.mxu0 0
        %1054 = vmatpush1.bf16.msra.mxu0 0
        %1055 = vmatprep.mubr.bf16.mxu0 0
        %1056 = vmatmul.mubr.bf16.gmra.mrb[0].mxu0 %v1022
        %v1057 = vpop.f32.mrb[0].mxu0
        %v1058 = vadd.f32 %v678, %v1057
        %v1059 = vpop.f32.mrb[0].mxu0
        %v1060 = vadd.f32 %v682, %v1059
        %v1061 = vpop.f32.mrb[0].mxu0
        %v1062 = vpop.f32.mrb[0].mxu0
        %1063 = vdwg.mxu0
        %1064 = vmatprep.subr.bf16.mxu0 0
        %1065 = vmatpush1.bf16.msra.mxu0 %v651
        %1066 = vmatprep.subr.bf16.mxu0 0
        %1067 = vmatpush1.bf16.msra.mxu0 %v654
        %1068 = vmatprep.subr.bf16.mxu0 0
        %1069 = vmatpush1.bf16.msra.mxu0 %v657
        %1070 = vmatprep.subr.bf16.mxu0 0
        %1071 = vmatpush1.bf16.msra.mxu0 %v660
        %1072 = vmatprep.subr.bf16.mxu0 0
        %1073 = vmatpush1.bf16.msra.mxu0 %v663
        %1074 = vmatprep.subr.bf16.mxu0 0
        %1075 = vmatpush1.bf16.msra.mxu0 %v666
        %1076 = vmatprep.subr.bf16.mxu0 0
        %1077 = vmatpush1.bf16.msra.mxu0 %v669
        %1078 = vmatprep.subr.bf16.mxu0 0
        %1079 = vmatpush1.bf16.msra.mxu0 %v672
        %1080 = vmatprep.subr.bf16.mxu0 0
        %1081 = vmatpush1.bf16.msra.mxu0 0
        %1082 = vmatprep.subr.bf16.mxu0 0
        %1083 = vmatpush1.bf16.msra.mxu0 0
        %1084 = vmatprep.subr.bf16.mxu0 0
        %1085 = vmatpush1.bf16.msra.mxu0 0
        %1086 = vmatprep.subr.bf16.mxu0 0
        %1087 = vmatpush1.bf16.msra.mxu0 0
        %1088 = vmatprep.subr.bf16.mxu0 0
        %1089 = vmatpush1.bf16.msra.mxu0 0
        %1090 = vmatprep.subr.bf16.mxu0 0
        %1091 = vmatpush1.bf16.msra.mxu0 0
        %1092 = vmatprep.subr.bf16.mxu0 0
        %1093 = vmatpush1.bf16.msra.mxu0 0
        %1094 = vmatprep.subr.bf16.mxu0 0
        %1095 = vmatpush1.bf16.msra.mxu0 0
        %1096 = vmatprep.mubr.bf16.mxu0 0
        %1097 = vmatmul.mubr.bf16.gmra.mrb[0].mxu0 %v1022
        %v1098 = vpop.f32.mrb[0].mxu0
        %v1099 = vadd.f32 %v686, %v1098
        %v1100 = vpop.f32.mrb[0].mxu0
        %v1101 = vpop.f32.mrb[0].mxu0
        %v1102 = vpop.f32.mrb[0].mxu0
        %1103 = vdwg.mxu0
        %v1104 = vadd.f32 %v1019, %v1058
        %v1105 = vxor.u32 %v1104, 2147483648
        %v1106 = vmul.f32 %v1105, 1.442695
        %v1107 = vpow.pop %v1106
        %v1108 = vadd.f32 %v1107, 1.0
        %v1109 = vrcp.pop %v1108
        %v1110 = vmul.f32 1.0, %v1109
        %v1111 = vadd.f32 %v1020, %v1060
        %v1112 = vxor.u32 %v1111, 2147483648
        %v1113 = vmul.f32 %v1112, 1.442695
        %v1114 = vpow.pop %v1113
        %v1115 = vadd.f32 %v1114, 1.0
        %v1116 = vrcp.pop %v1115
        %v1117 = vmul.f32 1.0, %v1116
        %v1118 = vmul.f32 %v1110, %v1099
        %v1119 = vadd.f32 %v1021, %v1118
        %v1120 = vtanh.pop %v1119
        %v1121 = vsub.f32 1.0, %v1117
        %v1122 = vmul.f32 %v1121, %v1120
        %v1123 = vmul.f32 %v1117, %v1015
        %v1124 = vadd.f32 %v1122, %v1123
        %s1125 = smul.u32 4, 3
        %s1126 = smul.addr %s1125, 8
        %s1127 = scalar_lea.vmem [#allocation2], %s1126
        %v1128 = vld [vmem:[%s1127] sm:$0xff]
        %v1129 = vld [vmem:[%s1127 + $0x8] sm:$0xff]
        %v1130 = vld [vmem:[%s1127 + $0x10] sm:$0xff]
        %v1131 = vpack.c.bf16 %v1124, %v1124
        %1132 = vmatprep.subr.bf16.mxu0 %v650
        %1133 = vmatpush1.bf16.msra.mxu0 %v649
        %1134 = vmatprep.subr.bf16.mxu0 %v653
        %1135 = vmatpush1.bf16.msra.mxu0 %v652
        %1136 = vmatprep.subr.bf16.mxu0 %v656
        %1137 = vmatpush1.bf16.msra.mxu0 %v655
        %1138 = vmatprep.subr.bf16.mxu0 %v659
        %1139 = vmatpush1.bf16.msra.mxu0 %v658
        %1140 = vmatprep.subr.bf16.mxu0 %v662
        %1141 = vmatpush1.bf16.msra.mxu0 %v661
        %1142 = vmatprep.subr.bf16.mxu0 %v665
        %1143 = vmatpush1.bf16.msra.mxu0 %v664
        %1144 = vmatprep.subr.bf16.mxu0 %v668
        %1145 = vmatpush1.bf16.msra.mxu0 %v667
        %1146 = vmatprep.subr.bf16.mxu0 %v671
        %1147 = vmatpush1.bf16.msra.mxu0 %v670
        %1148 = vmatprep.subr.bf16.mxu0 0
        %1149 = vmatpush1.bf16.msra.mxu0 0
        %1150 = vmatprep.subr.bf16.mxu0 0
        %1151 = vmatpush1.bf16.msra.mxu0 0
        %1152 = vmatprep.subr.bf16.mxu0 0
        %1153 = vmatpush1.bf16.msra.mxu0 0
        %1154 = vmatprep.subr.bf16.mxu0 0
        %1155 = vmatpush1.bf16.msra.mxu0 0
        %1156 = vmatprep.subr.bf16.mxu0 0
        %1157 = vmatpush1.bf16.msra.mxu0 0
        %1158 = vmatprep.subr.bf16.mxu0 0
        %1159 = vmatpush1.bf16.msra.mxu0 0
        %1160 = vmatprep.subr.bf16.mxu0 0
        %1161 = vmatpush1.bf16.msra.mxu0 0
        %1162 = vmatprep.subr.bf16.mxu0 0
        %1163 = vmatpush1.bf16.msra.mxu0 0
        %1164 = vmatprep.mubr.bf16.mxu0 0
        %1165 = vmatmul.mubr.bf16.gmra.mrb[0].mxu0 %v1131
        %v1166 = vpop.f32.mrb[0].mxu0
        %v1167 = vadd.f32 %v678, %v1166
        %v1168 = vpop.f32.mrb[0].mxu0
        %v1169 = vadd.f32 %v682, %v1168
        %v1170 = vpop.f32.mrb[0].mxu0
        %v1171 = vpop.f32.mrb[0].mxu0
        %1172 = vdwg.mxu0
        %1173 = vmatprep.subr.bf16.mxu0 0
        %1174 = vmatpush1.bf16.msra.mxu0 %v651
        %1175 = vmatprep.subr.bf16.mxu0 0
        %1176 = vmatpush1.bf16.msra.mxu0 %v654
        %1177 = vmatprep.subr.bf16.mxu0 0
        %1178 = vmatpush1.bf16.msra.mxu0 %v657
        %1179 = vmatprep.subr.bf16.mxu0 0
        %1180 = vmatpush1.bf16.msra.mxu0 %v660
        %1181 = vmatprep.subr.bf16.mxu0 0
        %1182 = vmatpush1.bf16.msra.mxu0 %v663
        %1183 = vmatprep.subr.bf16.mxu0 0
        %1184 = vmatpush1.bf16.msra.mxu0 %v666
        %1185 = vmatprep.subr.bf16.mxu0 0
        %1186 = vmatpush1.bf16.msra.mxu0 %v669
        %1187 = vmatprep.subr.bf16.mxu0 0
        %1188 = vmatpush1.bf16.msra.mxu0 %v672
        %1189 = vmatprep.subr.bf16.mxu0 0
        %1190 = vmatpush1.bf16.msra.mxu0 0
        %1191 = vmatprep.subr.bf16.mxu0 0
        %1192 = vmatpush1.bf16.msra.mxu0 0
        %1193 = vmatprep.subr.bf16.mxu0 0
        %1194 = vmatpush1.bf16.msra.mxu0 0
        %1195 = vmatprep.subr.bf16.mxu0 0
        %1196 = vmatpush1.bf16.msra.mxu0 0
        %1197 = vmatprep.subr.bf16.mxu0 0
        %1198 = vmatpush1.bf16.msra.mxu0 0
        %1199 = vmatprep.subr.bf16.mxu0 0
        %1200 = vmatpush1.bf16.msra.mxu0 0
        %1201 = vmatprep.subr.bf16.mxu0 0
        %1202 = vmatpush1.bf16.msra.mxu0 0
        %1203 = vmatprep.subr.bf16.mxu0 0
        %1204 = vmatpush1.bf16.msra.mxu0 0
        %1205 = vmatprep.mubr.bf16.mxu0 0
        %1206 = vmatmul.mubr.bf16.gmra.mrb[0].mxu0 %v1131
        %v1207 = vpop.f32.mrb[0].mxu0
        %v1208 = vadd.f32 %v686, %v1207
        %v1209 = vpop.f32.mrb[0].mxu0
        %v1210 = vpop.f32.mrb[0].mxu0
        %v1211 = vpop.f32.mrb[0].mxu0
        %1212 = vdwg.mxu0
        %v1213 = vadd.f32 %v1128, %v1167
        %v1214 = vxor.u32 %v1213, 2147483648
        %v1215 = vmul.f32 %v1214, 1.442695
        %v1216 = vpow.pop %v1215
        %v1217 = vadd.f32 %v1216, 1.0
        %v1218 = vrcp.pop %v1217
        %v1219 = vmul.f32 1.0, %v1218
        %v1220 = vadd.f32 %v1129, %v1169
        %v1221 = vxor.u32 %v1220, 2147483648
        %v1222 = vmul.f32 %v1221, 1.442695
        %v1223 = vpow.pop %v1222
        %v1224 = vadd.f32 %v1223, 1.0
        %v1225 = vrcp.pop %v1224
        %v1226 = vmul.f32 1.0, %v1225
        %v1227 = vmul.f32 %v1219, %v1208
        %v1228 = vadd.f32 %v1130, %v1227
        %v1229 = vtanh.pop %v1228
        %v1230 = vsub.f32 1.0, %v1226
        %v1231 = vmul.f32 %v1230, %v1229
        %v1232 = vmul.f32 %v1226, %v1124
        %v1233 = vadd.f32 %v1231, %v1232
        %s1234 = smul.u32 5, 3
        %s1235 = smul.addr %s1234, 8
        %s1236 = scalar_lea.vmem [#allocation2], %s1235
        %v1237 = vld [vmem:[%s1236] sm:$0xff]
        %v1238 = vld [vmem:[%s1236 + $0x8] sm:$0xff]
        %v1239 = vld [vmem:[%s1236 + $0x10] sm:$0xff]
        %v1240 = vpack.c.bf16 %v1233, %v1233
        %1241 = vmatprep.subr.bf16.mxu0 %v650
        %1242 = vmatpush1.bf16.msra.mxu0 %v649
        %1243 = vmatprep.subr.bf16.mxu0 %v653
        %1244 = vmatpush1.bf16.msra.mxu0 %v652
        %1245 = vmatprep.subr.bf16.mxu0 %v656
        %1246 = vmatpush1.bf16.msra.mxu0 %v655
        %1247 = vmatprep.subr.bf16.mxu0 %v659
        %1248 = vmatpush1.bf16.msra.mxu0 %v658
        %1249 = vmatprep.subr.bf16.mxu0 %v662
        %1250 = vmatpush1.bf16.msra.mxu0 %v661
        %1251 = vmatprep.subr.bf16.mxu0 %v665
        %1252 = vmatpush1.bf16.msra.mxu0 %v664
        %1253 = vmatprep.subr.bf16.mxu0 %v668
        %1254 = vmatpush1.bf16.msra.mxu0 %v667
        %1255 = vmatprep.subr.bf16.mxu0 %v671
        %1256 = vmatpush1.bf16.msra.mxu0 %v670
        %1257 = vmatprep.subr.bf16.mxu0 0
        %1258 = vmatpush1.bf16.msra.mxu0 0
        %1259 = vmatprep.subr.bf16.mxu0 0
        %1260 = vmatpush1.bf16.msra.mxu0 0
        %1261 = vmatprep.subr.bf16.mxu0 0
        %1262 = vmatpush1.bf16.msra.mxu0 0
        %1263 = vmatprep.subr.bf16.mxu0 0
        %1264 = vmatpush1.bf16.msra.mxu0 0
        %1265 = vmatprep.subr.bf16.mxu0 0
        %1266 = vmatpush1.bf16.msra.mxu0 0
        %1267 = vmatprep.subr.bf16.mxu0 0
        %1268 = vmatpush1.bf16.msra.mxu0 0
        %1269 = vmatprep.subr.bf16.mxu0 0
        %1270 = vmatpush1.bf16.msra.mxu0 0
        %1271 = vmatprep.subr.bf16.mxu0 0
        %1272 = vmatpush1.bf16.msra.mxu0 0
        %1273 = vmatprep.mubr.bf16.mxu0 0
        %1274 = vmatmul.mubr.bf16.gmra.mrb[0].mxu0 %v1240
        %v1275 = vpop.f32.mrb[0].mxu0
        %v1276 = vadd.f32 %v678, %v1275
        %v1277 = vpop.f32.mrb[0].mxu0
        %v1278 = vadd.f32 %v682, %v1277
        %v1279 = vpop.f32.mrb[0].mxu0
        %v1280 = vpop.f32.mrb[0].mxu0
        %1281 = vdwg.mxu0
        %1282 = vmatprep.subr.bf16.mxu0 0
        %1283 = vmatpush1.bf16.msra.mxu0 %v651
        %1284 = vmatprep.subr.bf16.mxu0 0
        %1285 = vmatpush1.bf16.msra.mxu0 %v654
        %1286 = vmatprep.subr.bf16.mxu0 0
        %1287 = vmatpush1.bf16.msra.mxu0 %v657
        %1288 = vmatprep.subr.bf16.mxu0 0
        %1289 = vmatpush1.bf16.msra.mxu0 %v660
        %1290 = vmatprep.subr.bf16.mxu0 0
        %1291 = vmatpush1.bf16.msra.mxu0 %v663
        %1292 = vmatprep.subr.bf16.mxu0 0
        %1293 = vmatpush1.bf16.msra.mxu0 %v666
        %1294 = vmatprep.subr.bf16.mxu0 0
        %1295 = vmatpush1.bf16.msra.mxu0 %v669
        %1296 = vmatprep.subr.bf16.mxu0 0
        %1297 = vmatpush1.bf16.msra.mxu0 %v672
        %1298 = vmatprep.subr.bf16.mxu0 0
        %1299 = vmatpush1.bf16.msra.mxu0 0
        %1300 = vmatprep.subr.bf16.mxu0 0
        %1301 = vmatpush1.bf16.msra.mxu0 0
        %1302 = vmatprep.subr.bf16.mxu0 0
        %1303 = vmatpush1.bf16.msra.mxu0 0
        %1304 = vmatprep.subr.bf16.mxu0 0
        %1305 = vmatpush1.bf16.msra.mxu0 0
        %1306 = vmatprep.subr.bf16.mxu0 0
        %1307 = vmatpush1.bf16.msra.mxu0 0
        %1308 = vmatprep.subr.bf16.mxu0 0
        %1309 = vmatpush1.bf16.msra.mxu0 0
        %1310 = vmatprep.subr.bf16.mxu0 0
        %1311 = vmatpush1.bf16.msra.mxu0 0
        %1312 = vmatprep.subr.bf16.mxu0 0
        %1313 = vmatpush1.bf16.msra.mxu0 0
        %1314 = vmatprep.mubr.bf16.mxu0 0
        %1315 = vmatmul.mubr.bf16.gmra.mrb[0].mxu0 %v1240
        %v1316 = vpop.f32.mrb[0].mxu0
        %v1317 = vadd.f32 %v686, %v1316
        %v1318 = vpop.f32.mrb[0].mxu0
        %v1319 = vpop.f32.mrb[0].mxu0
        %v1320 = vpop.f32.mrb[0].mxu0
        %1321 = vdwg.mxu0
        %v1322 = vadd.f32 %v1237, %v1276
        %v1323 = vxor.u32 %v1322, 2147483648
        %v1324 = vmul.f32 %v1323, 1.442695
        %v1325 = vpow.pop %v1324
        %v1326 = vadd.f32 %v1325, 1.0
        %v1327 = vrcp.pop %v1326
        %v1328 = vmul.f32 1.0, %v1327
        %v1329 = vadd.f32 %v1238, %v1278
        %v1330 = vxor.u32 %v1329, 2147483648
        %v1331 = vmul.f32 %v1330, 1.442695
        %v1332 = vpow.pop %v1331
        %v1333 = vadd.f32 %v1332, 1.0
        %v1334 = vrcp.pop %v1333
        %v1335 = vmul.f32 1.0, %v1334
        %v1336 = vmul.f32 %v1328, %v1317
        %v1337 = vadd.f32 %v1239, %v1336
        %v1338 = vtanh.pop %v1337
        %v1339 = vsub.f32 1.0, %v1335
        %v1340 = vmul.f32 %v1339, %v1338
        %v1341 = vmul.f32 %v1335, %v1233
        %v1342 = vadd.f32 %v1340, %v1341
        %1343 = vst.msk [vmem:[%s275] sm:$0xff] %vm304, %v1342
        %s1344 = sand.u32 %s161, 1
        %s1345 = scalar_lea.sflag [#allocation5], %s1344
        %s1346 = sand.u32 %s161, 1
        %s1347 = smul.addr %s1346, 8
        %s1348 = scalar_lea.vmem [#allocation8], %s1347
        // Predicated region
        $region53: #{tpu_custom_call.1} parent=43 // pred_check
          %p1349 = pneg %p171
        $region54: #{tpu_custom_call.1} parent=43 // pred_check_branch
          %1351 = sbr.rel (%p1349) target = $region56
        $region55: #{tpu_custom_call.1} parent=43 // pred_region
          %s1353 = ssub.s32 128, 128
          %1354 = vsyncadd %s1345, %s1353
          %s1355 = smul.addr %s22, 128
          %s1356 = scalar_lea.hbm %s6, %s1355
          %s1358 = sshll.u32 %s1348, 4
          %s1359 = int_to_ptr.vmem [resolvable:$true] %s1358
          %1361 = dma.vmem_to_hbm [thread:$0]  %s1359, 128, %s1356, %s1345
        $region56: #{tpu_custom_call.1} parent=43 // pred_fallthru
          _
      $region44: #{tpu_custom_call.1} parent=5 // pred_fallthru
        _
      %p1362 = scmp.le.s32.totalorder 2, %s17
      // Predicated region
      $region57: #{tpu_custom_call.1} parent=5 // pred_check
        %p1363 = pneg %p1362
      $region58: #{tpu_custom_call.1} parent=5 // pred_check_branch
        %1365 = sbr.rel (%p1363) target = $region60
      $region59: #{tpu_custom_call.1} parent=5 // pred_region
        %s1366 = ssub.s32 %s17, 2
        // Predicated region
        $region61: #{tpu_custom_call.1} parent=59 // pred_check
          %p1367 = pneg %p177
        $region62: #{tpu_custom_call.1} parent=59 // pred_check_branch
          %1369 = sbr.rel (%p1367) target = $region64
        $region63: #{tpu_custom_call.1} parent=59 // pred_region
          %s1370 = sand.u32 %s162, 1
          %s1371 = scalar_lea.sflag [#allocation5], %s1370
          %s1372 = sand.u32 %s162, 1
          %s1373 = smul.addr %s1372, 8
          %s1374 = scalar_lea.vmem [#allocation8], %s1373
          %1375 = dma.done %s1371, 128
        $region64: #{tpu_custom_call.1} parent=59 // pred_fallthru
          _
      $region60: #{tpu_custom_call.1} parent=5 // pred_fallthru
        _
    $region6: #{tpu_custom_call.1} parent=1 // loop_footer
      %s21 = sadd.s32 1, %s17
    $region7: #{tpu_custom_call.1} parent=1 // loop_footer_branch
      %16 = sbr.rel target = $region3
    $region8: #{tpu_custom_call.1} parent=1 // loop_exit
      _
    %1376 = vsyncpa [#allocation4], 1
    %s1377 = scalar_lea.sflag [#allocation4], 1
    %1378 = vsyncpa %s1377, 1
    %1379 = vsyncpa [#allocation7], 1
    %1380 = vsyncpa [#allocation5], 1
    %s1381 = scalar_lea.sflag [#allocation5], 1
    %1382 = vsyncpa %s1381, 1

</llo_original>
